<compile_context>
chip_gen: v5e
topology: v5e:2x2
jax: 0.10.0
libtpu: 0.0.40
codegen_flags: <defaults>
</compile_context>

<pallas_src>
import math

import numpy as np
import jax
import jax.numpy as jnp
from jax.experimental import pallas as pl
from jax.experimental.pallas import tpu as pltpu


# ----------------------------------------------------------------------------
# Fixed network geometry (CIFAR 32x32x3 input, as required by the 16*5*5 view)
# ----------------------------------------------------------------------------
H0, W0, C0 = 32, 32, 3
K = 5
C1 = 6
H1, W1 = H0 - K + 1, W0 - K + 1          # 28, 28
H1P, W1P = H1 // 2, W1 // 2              # 14, 14
C2 = 16
H2, W2 = H1P - K + 1, W1P - K + 1        # 10, 10
H2P, W2P = H2 // 2, W2 // 2              # 5, 5
F1, F2, F3 = 120, 84, 10
FLAT = C2 * H2P * W2P                    # 400


# ----------------------------------------------------------------------------
# The single fused Pallas kernel: whole forward pass for one image per grid step
# ----------------------------------------------------------------------------
def _simplenet_kernel(
    x_ref,
    t1_ref, b1_ref, se1_ref, so1_ref, re1_ref, ro1_ref,
    t2_ref, b2_ref, se2_ref, so2_ref, re2_ref, ro2_ref,
    wf1_ref, bf1_ref, wf2_ref, bf2_ref, wf3_ref, bf3_ref,
    o_ref,
):
    def dot(a, b):
        return jnp.dot(a, b, preferred_element_type=jnp.float32)

    x = x_ref[0]                                                       # (32, 96) = (H, W*C)

    # conv1 (5x5, 3->6) as one block-Toeplitz matmul, fused bias + ReLU
    x1 = jnp.concatenate([x[dh:dh + H1, :] for dh in range(K)], axis=1)   # (28, 480)
    y1 = jnp.maximum(dot(x1, t1_ref[...]) + b1_ref[...], 0.0)             # (28, 168) = (Ho, Wo*C1)

    # fused 2x2 max-pool: row-pair / column-pair picks via constant 0/1 matmuls
    yh1 = jnp.maximum(dot(se1_ref[...], y1), dot(so1_ref[...], y1))       # (14, 168)
    p1 = jnp.maximum(dot(yh1, re1_ref[...]), dot(yh1, ro1_ref[...]))      # (14, 84) = (H, W*C1)

    # conv2 (5x5, 6->16) + bias + ReLU
    x2 = jnp.concatenate([p1[dh:dh + H2, :] for dh in range(K)], axis=1)  # (10, 420)
    y2 = jnp.maximum(dot(x2, t2_ref[...]) + b2_ref[...], 0.0)             # (10, 160) = (Ho, Wo*C2)

    # fused 2x2 max-pool
    yh2 = jnp.maximum(dot(se2_ref[...], y2), dot(so2_ref[...], y2))       # (5, 160)
    p2 = jnp.maximum(dot(yh2, re2_ref[...]), dot(yh2, ro2_ref[...]))      # (5, 80) = (H, W*C2)

    # flatten by lane-concat of rows; torch's (c,h,w) order is pre-baked into wf1
    flat = jnp.concatenate([p2[h:h + 1, :] for h in range(H2P)], axis=1)  # (1, 400)

    # fc1 -> fc2 -> fc3, all fused (weights stay VMEM-resident)
    h1 = jnp.maximum(dot(flat, wf1_ref[...]) + bf1_ref[...], 0.0)         # (1, 120)
    h2 = jnp.maximum(dot(h1, wf2_ref[...]) + bf2_ref[...], 0.0)           # (1, 84)
    out = dot(h2, wf3_ref[...]) + bf3_ref[...]                            # (1, 10)

    o_ref[0] = out.astype(o_ref.dtype)


# ----------------------------------------------------------------------------
# Parameter prep (done once, off the forward path)
# ----------------------------------------------------------------------------
def _conv_toeplitz(w, w_in):
    """w: (Cout, Cin, K, K) torch conv weight -> (K*w_in*Cin, Wo*Cout) matrix T.

    With X[ho, dh*(w_in*Cin) + w*Cin + ci] = x[ho+dh, w, ci], X @ T gives the
    valid conv output laid out as [ho, wo*Cout + co].
    """
    c_out, c_in, kh, kw = w.shape
    wo_n = w_in - kw + 1
    w = np.asarray(w, np.float32)
    T = np.zeros((kh * w_in * c_in, wo_n * c_out), np.float32)
    for dh in range(kh):
        for wo in range(wo_n):
            for dw in range(kw):
                r0 = dh * (w_in * c_in) + (wo + dw) * c_in
                T[r0:r0 + c_in, wo * c_out:(wo + 1) * c_out] = w[:, :, dh, dw].T
    return T


def _pool_selectors(ho, wo, c):
    """Constant 0/1 matrices implementing 2x2/stride-2 max-pool as pair picks."""
    se = np.zeros((ho // 2, ho), np.float32)
    so = np.zeros((ho // 2, ho), np.float32)
    se[np.arange(ho // 2), 2 * np.arange(ho // 2)] = 1.0
    so[np.arange(ho // 2), 2 * np.arange(ho // 2) + 1] = 1.0
    re = np.zeros((wo * c, (wo // 2) * c), np.float32)
    ro = np.zeros((wo * c, (wo // 2) * c), np.float32)
    eye = np.eye(c, dtype=np.float32)
    for wp in range(wo // 2):
        re[(2 * wp) * c:(2 * wp + 1) * c, wp * c:(wp + 1) * c] = eye
        ro[(2 * wp + 1) * c:(2 * wp + 2) * c, wp * c:(wp + 1) * c] = eye
    return se, so, re, ro


def init_torch_params(key):
    """Torch-layout params, mimicking PyTorch's U(-1/sqrt(fan_in), 1/sqrt(fan_in))."""
    ks = jax.random.split(key, 10)

    def u(k, shape, fan_in):
        b = 1.0 / math.sqrt(fan_in)
        return jax.random.uniform(k, shape, jnp.float32, -b, b)

    return {
        "conv1_w": u(ks[0], (C1, C0, K, K), C0 * K * K),
        "conv1_b": u(ks[1], (C1,), C0 * K * K),
        "conv2_w": u(ks[2], (C2, C1, K, K), C1 * K * K),
        "conv2_b": u(ks[3], (C2,), C1 * K * K),
        "fc1_w": u(ks[4], (F1, FLAT), FLAT),
        "fc1_b": u(ks[5], (F1,), FLAT),
        "fc2_w": u(ks[6], (F2, F1), F1),
        "fc2_b": u(ks[7], (F2,), F1),
        "fc3_w": u(ks[8], (F3, F2), F2),
        "fc3_b": u(ks[9], (F3,), F2),
    }


def prepare_kernel_params(tp):
    p = {k: np.asarray(v, np.float32) for k, v in tp.items()}

    t1 = _conv_toeplitz(p["conv1_w"], W0)                  # (480, 168)
    b1 = np.tile(p["conv1_b"], W1)[None, :]                # (1, 168)
    se1, so1, re1, ro1 = _pool_selectors(H1, W1, C1)

    t2 = _conv_toeplitz(p["conv2_w"], W1P)                 # (420, 160)
    b2 = np.tile(p["conv2_b"], W2)[None, :]                # (1, 160)
    se2, so2, re2, ro2 = _pool_selectors(H2, W2, C2)

    # kernel flatten order is h*(W2P*C2) + w*C2 + c; torch's view order is
    # c*(H2P*W2P) + h*W2P + w.  Permute fc1 rows once instead of permuting
    # activations every forward pass.
    wf1_t = p["fc1_w"].T                                   # (400, 120)
    perm = np.zeros(FLAT, np.int64)
    for h in range(H2P):
        for w in range(W2P):
            for c in range(C2):
                perm[h * (W2P * C2) + w * C2 + c] = c * (H2P * W2P) + h * W2P + w
    wf1 = wf1_t[perm, :]

    return {
        "t1": jnp.asarray(t1), "b1": jnp.asarray(b1),
        "se1": jnp.asarray(se1), "so1": jnp.asarray(so1),
        "re1": jnp.asarray(re1), "ro1": jnp.asarray(ro1),
        "t2": jnp.asarray(t2), "b2": jnp.asarray(b2),
        "se2": jnp.asarray(se2), "so2": jnp.asarray(so2),
        "re2": jnp.asarray(re2), "ro2": jnp.asarray(ro2),
        "wf1": jnp.asarray(wf1), "bf1": jnp.asarray(p["fc1_b"][None, :]),
        "wf2": jnp.asarray(p["fc2_w"].T), "bf2": jnp.asarray(p["fc2_b"][None, :]),
        "wf3": jnp.asarray(p["fc3_w"].T), "bf3": jnp.asarray(p["fc3_b"][None, :]),
    }


_KP_ORDER = ("t1", "b1", "se1", "so1", "re1", "ro1",
             "t2", "b2", "se2", "so2", "re2", "ro2",
             "wf1", "bf1", "wf2", "bf2", "wf3", "bf3")


# ----------------------------------------------------------------------------
# Forward: one pallas_call for the whole network, grid over the batch
# ----------------------------------------------------------------------------
def simplenet_forward(x_nchw, kparams):
    n = x_nchw.shape[0]
    assert x_nchw.shape[1:] == (C0, H0, W0)
    # NCHW -> NHWC -> (N, H, W*C): tiny layout glue on the raw input only.
    x = jnp.transpose(x_nchw, (0, 2, 3, 1)).reshape(n, H0, W0 * C0)

    weights = [kparams[k] for k in _KP_ORDER]

    def const_spec(a):
        return pl.BlockSpec(a.shape, lambda i: (0, 0))

    out = pl.pallas_call(
        _simplenet_kernel,
        out_shape=jax.ShapeDtypeStruct((n, 1, F3), jnp.float32),
        grid=(n,),
        in_specs=[pl.BlockSpec((1, H0, W0 * C0), lambda i: (i, 0, 0))]
                 + [const_spec(w) for w in weights],
        out_specs=pl.BlockSpec((1, 1, F3), lambda i: (i, 0, 0)),
        compiler_params=pltpu.CompilerParams(
            dimension_semantics=("parallel",)),
    )(x, *weights)
    return out.reshape(n, F3)


if __name__ == "__main__":
    key = jax.random.PRNGKey(0)
    kx, kp_key = jax.random.split(key)

    # CIFAR-sized input is required by the 16*5*5 flatten; keep batch small.
    x = jax.random.normal(kx, (2, C0, H0, W0), jnp.float32)
    torch_params = init_torch_params(kp_key)
    kparams = prepare_kernel_params(torch_params)

    fwd = jax.jit(simplenet_forward)
    out = jax.block_until_ready(fwd(x, kparams))

    assert out.shape == (2, F3), out.shape
    assert bool(jnp.all(jnp.isfinite(out)))
    print("KERNEL_OK")
</pallas_src>

<mosaic_0001>
module attributes {stable_mosaic.version = 11 : i64} {
  func.func @_simplenet_kernel(%arg0: i32, %arg1: memref<1x32x96xf32, #tpu.memory_space<vmem>>, %arg2: memref<480x168xf32, #tpu.memory_space<vmem>>, %arg3: memref<1x168xf32, #tpu.memory_space<vmem>>, %arg4: memref<14x28xf32, #tpu.memory_space<vmem>>, %arg5: memref<14x28xf32, #tpu.memory_space<vmem>>, %arg6: memref<168x84xf32, #tpu.memory_space<vmem>>, %arg7: memref<168x84xf32, #tpu.memory_space<vmem>>, %arg8: memref<420x160xf32, #tpu.memory_space<vmem>>, %arg9: memref<1x160xf32, #tpu.memory_space<vmem>>, %arg10: memref<5x10xf32, #tpu.memory_space<vmem>>, %arg11: memref<5x10xf32, #tpu.memory_space<vmem>>, %arg12: memref<160x80xf32, #tpu.memory_space<vmem>>, %arg13: memref<160x80xf32, #tpu.memory_space<vmem>>, %arg14: memref<400x120xf32, #tpu.memory_space<vmem>>, %arg15: memref<1x120xf32, #tpu.memory_space<vmem>>, %arg16: memref<120x84xf32, #tpu.memory_space<vmem>>, %arg17: memref<1x84xf32, #tpu.memory_space<vmem>>, %arg18: memref<84x10xf32, #tpu.memory_space<vmem>>, %arg19: memref<1x10xf32, #tpu.memory_space<vmem>>, %arg20: memref<1x1x10xf32, #tpu.memory_space<vmem>>) attributes {dimension_semantics = [#tpu.dimension_semantics<parallel>], iteration_bounds = array<i64: 2>, scalar_prefetch = 0 : i64, scratch_operands = 0 : i64, tpu.core_type = #tpu.core_type<tc>, window_params = [{transform_indices = @transform_0, window_bounds = array<i64: 1, 32, 96>}, {pipeline_mode = #tpu.pipeline_mode<synchronous>, transform_indices = @transform_1, window_bounds = array<i64: 480, 168>}, {pipeline_mode = #tpu.pipeline_mode<synchronous>, transform_indices = @transform_2, window_bounds = array<i64: 1, 168>}, {pipeline_mode = #tpu.pipeline_mode<synchronous>, transform_indices = @transform_3, window_bounds = array<i64: 14, 28>}, {pipeline_mode = #tpu.pipeline_mode<synchronous>, transform_indices = @transform_4, window_bounds = array<i64: 14, 28>}, {pipeline_mode = #tpu.pipeline_mode<synchronous>, transform_indices = @transform_5, window_bounds = array<i64: 168, 84>}, {pipeline_mode = #tpu.pipeline_mode<synchronous>, transform_indices = @transform_6, window_bounds = array<i64: 168, 84>}, {pipeline_mode = #tpu.pipeline_mode<synchronous>, transform_indices = @transform_7, window_bounds = array<i64: 420, 160>}, {pipeline_mode = #tpu.pipeline_mode<synchronous>, transform_indices = @transform_8, window_bounds = array<i64: 1, 160>}, {pipeline_mode = #tpu.pipeline_mode<synchronous>, transform_indices = @transform_9, window_bounds = array<i64: 5, 10>}, {pipeline_mode = #tpu.pipeline_mode<synchronous>, transform_indices = @transform_10, window_bounds = array<i64: 5, 10>}, {pipeline_mode = #tpu.pipeline_mode<synchronous>, transform_indices = @transform_11, window_bounds = array<i64: 160, 80>}, {pipeline_mode = #tpu.pipeline_mode<synchronous>, transform_indices = @transform_12, window_bounds = array<i64: 160, 80>}, {pipeline_mode = #tpu.pipeline_mode<synchronous>, transform_indices = @transform_13, window_bounds = array<i64: 400, 120>}, {pipeline_mode = #tpu.pipeline_mode<synchronous>, transform_indices = @transform_14, window_bounds = array<i64: 1, 120>}, {pipeline_mode = #tpu.pipeline_mode<synchronous>, transform_indices = @transform_15, window_bounds = array<i64: 120, 84>}, {pipeline_mode = #tpu.pipeline_mode<synchronous>, transform_indices = @transform_16, window_bounds = array<i64: 1, 84>}, {pipeline_mode = #tpu.pipeline_mode<synchronous>, transform_indices = @transform_17, window_bounds = array<i64: 84, 10>}, {pipeline_mode = #tpu.pipeline_mode<synchronous>, transform_indices = @transform_18, window_bounds = array<i64: 1, 10>}, {transform_indices = @transform_19, window_bounds = array<i64: 1, 1, 10>}]} {
    %c0 = arith.constant 0 : index
    %c0_0 = arith.constant 0 : index
    %c0_1 = arith.constant 0 : index
    %0 = vector.load %arg1[%c0, %c0_0, %c0_1] : memref<1x32x96xf32, #tpu.memory_space<vmem>>, vector<1x32x96xf32>
    %1 = vector.shape_cast %0 : vector<1x32x96xf32> to vector<32x96xf32>
    %2 = vector.extract_strided_slice %1 {offsets = [0, 0], sizes = [28, 96], strides = [1, 1]} : vector<32x96xf32> to vector<28x96xf32>
    %3 = vector.extract_strided_slice %1 {offsets = [1, 0], sizes = [28, 96], strides = [1, 1]} : vector<32x96xf32> to vector<28x96xf32>
    %4 = vector.extract_strided_slice %1 {offsets = [2, 0], sizes = [28, 96], strides = [1, 1]} : vector<32x96xf32> to vector<28x96xf32>
    %5 = vector.extract_strided_slice %1 {offsets = [3, 0], sizes = [28, 96], strides = [1, 1]} : vector<32x96xf32> to vector<28x96xf32>
    %6 = vector.extract_strided_slice %1 {offsets = [4, 0], sizes = [28, 96], strides = [1, 1]} : vector<32x96xf32> to vector<28x96xf32>
    %7 = tpu.concatenate %2, %3, %4, %5, %6 in 1 : vector<28x96xf32>, vector<28x96xf32>, vector<28x96xf32>, vector<28x96xf32>, vector<28x96xf32> -> vector<28x480xf32>
    %c0_2 = arith.constant 0 : index
    %c0_3 = arith.constant 0 : index
    %8 = vector.load %arg2[%c0_2, %c0_3] : memref<480x168xf32, #tpu.memory_space<vmem>>, vector<480x168xf32>
    %cst = arith.constant dense<0.000000e+00> : vector<28x168xf32>
    %9 = tpu.matmul %7, %8, %cst {dimension_numbers = #tpu.dot_dimension_numbers<[1], [0], [0], [1], [0, 0, 1, 1], [], []>} : vector<28x480xf32>, vector<480x168xf32>, vector<28x168xf32> -> vector<28x168xf32>
    %c0_4 = arith.constant 0 : index
    %c0_5 = arith.constant 0 : index
    %10 = vector.load %arg3[%c0_4, %c0_5] : memref<1x168xf32, #tpu.memory_space<vmem>>, vector<1x168xf32>
    %11 = vector.broadcast %10 : vector<1x168xf32> to vector<28x168xf32>
    %12 = arith.addf %9, %11 : vector<28x168xf32>
    %cst_6 = arith.constant 0.000000e+00 : f32
    %13 = vector.broadcast %cst_6 : f32 to vector<28x168xf32>
    %14 = arith.maximumf %12, %13 : vector<28x168xf32>
    %c0_7 = arith.constant 0 : index
    %c0_8 = arith.constant 0 : index
    %15 = vector.load %arg4[%c0_7, %c0_8] : memref<14x28xf32, #tpu.memory_space<vmem>>, vector<14x28xf32>
    %cst_9 = arith.constant dense<0.000000e+00> : vector<14x168xf32>
    %16 = tpu.matmul %15, %14, %cst_9 {dimension_numbers = #tpu.dot_dimension_numbers<[1], [0], [0], [1], [0, 0, 1, 1], [], []>} : vector<14x28xf32>, vector<28x168xf32>, vector<14x168xf32> -> vector<14x168xf32>
    %c0_10 = arith.constant 0 : index
    %c0_11 = arith.constant 0 : index
    %17 = vector.load %arg5[%c0_10, %c0_11] : memref<14x28xf32, #tpu.memory_space<vmem>>, vector<14x28xf32>
    %cst_12 = arith.constant dense<0.000000e+00> : vector<14x168xf32>
    %18 = tpu.matmul %17, %14, %cst_12 {dimension_numbers = #tpu.dot_dimension_numbers<[1], [0], [0], [1], [0, 0, 1, 1], [], []>} : vector<14x28xf32>, vector<28x168xf32>, vector<14x168xf32> -> vector<14x168xf32>
    %19 = arith.maximumf %16, %18 : vector<14x168xf32>
    %c0_13 = arith.constant 0 : index
    %c0_14 = arith.constant 0 : index
    %20 = vector.load %arg6[%c0_13, %c0_14] : memref<168x84xf32, #tpu.memory_space<vmem>>, vector<168x84xf32>
    %cst_15 = arith.constant dense<0.000000e+00> : vector<14x84xf32>
    %21 = tpu.matmul %19, %20, %cst_15 {dimension_numbers = #tpu.dot_dimension_numbers<[1], [0], [0], [1], [0, 0, 1, 1], [], []>} : vector<14x168xf32>, vector<168x84xf32>, vector<14x84xf32> -> vector<14x84xf32>
    %c0_16 = arith.constant 0 : index
    %c0_17 = arith.constant 0 : index
    %22 = vector.load %arg7[%c0_16, %c0_17] : memref<168x84xf32, #tpu.memory_space<vmem>>, vector<168x84xf32>
    %cst_18 = arith.constant dense<0.000000e+00> : vector<14x84xf32>
    %23 = tpu.matmul %19, %22, %cst_18 {dimension_numbers = #tpu.dot_dimension_numbers<[1], [0], [0], [1], [0, 0, 1, 1], [], []>} : vector<14x168xf32>, vector<168x84xf32>, vector<14x84xf32> -> vector<14x84xf32>
    %24 = arith.maximumf %21, %23 : vector<14x84xf32>
    %25 = vector.extract_strided_slice %24 {offsets = [0, 0], sizes = [10, 84], strides = [1, 1]} : vector<14x84xf32> to vector<10x84xf32>
    %26 = vector.extract_strided_slice %24 {offsets = [1, 0], sizes = [10, 84], strides = [1, 1]} : vector<14x84xf32> to vector<10x84xf32>
    %27 = vector.extract_strided_slice %24 {offsets = [2, 0], sizes = [10, 84], strides = [1, 1]} : vector<14x84xf32> to vector<10x84xf32>
    %28 = vector.extract_strided_slice %24 {offsets = [3, 0], sizes = [10, 84], strides = [1, 1]} : vector<14x84xf32> to vector<10x84xf32>
    %29 = vector.extract_strided_slice %24 {offsets = [4, 0], sizes = [10, 84], strides = [1, 1]} : vector<14x84xf32> to vector<10x84xf32>
    %30 = tpu.concatenate %25, %26, %27, %28, %29 in 1 : vector<10x84xf32>, vector<10x84xf32>, vector<10x84xf32>, vector<10x84xf32>, vector<10x84xf32> -> vector<10x420xf32>
    %c0_19 = arith.constant 0 : index
    %c0_20 = arith.constant 0 : index
    %31 = vector.load %arg8[%c0_19, %c0_20] : memref<420x160xf32, #tpu.memory_space<vmem>>, vector<420x160xf32>
    %cst_21 = arith.constant dense<0.000000e+00> : vector<10x160xf32>
    %32 = tpu.matmul %30, %31, %cst_21 {dimension_numbers = #tpu.dot_dimension_numbers<[1], [0], [0], [1], [0, 0, 1, 1], [], []>} : vector<10x420xf32>, vector<420x160xf32>, vector<10x160xf32> -> vector<10x160xf32>
    %c0_22 = arith.constant 0 : index
    %c0_23 = arith.constant 0 : index
    %33 = vector.load %arg9[%c0_22, %c0_23] : memref<1x160xf32, #tpu.memory_space<vmem>>, vector<1x160xf32>
    %34 = vector.broadcast %33 : vector<1x160xf32> to vector<10x160xf32>
    %35 = arith.addf %32, %34 : vector<10x160xf32>
    %cst_24 = arith.constant 0.000000e+00 : f32
    %36 = vector.broadcast %cst_24 : f32 to vector<10x160xf32>
    %37 = arith.maximumf %35, %36 : vector<10x160xf32>
    %c0_25 = arith.constant 0 : index
    %c0_26 = arith.constant 0 : index
    %38 = vector.load %arg10[%c0_25, %c0_26] : memref<5x10xf32, #tpu.memory_space<vmem>>, vector<5x10xf32>
    %cst_27 = arith.constant dense<0.000000e+00> : vector<5x160xf32>
    %39 = tpu.matmul %38, %37, %cst_27 {dimension_numbers = #tpu.dot_dimension_numbers<[1], [0], [0], [1], [0, 0, 1, 1], [], []>} : vector<5x10xf32>, vector<10x160xf32>, vector<5x160xf32> -> vector<5x160xf32>
    %c0_28 = arith.constant 0 : index
    %c0_29 = arith.constant 0 : index
    %40 = vector.load %arg11[%c0_28, %c0_29] : memref<5x10xf32, #tpu.memory_space<vmem>>, vector<5x10xf32>
    %cst_30 = arith.constant dense<0.000000e+00> : vector<5x160xf32>
    %41 = tpu.matmul %40, %37, %cst_30 {dimension_numbers = #tpu.dot_dimension_numbers<[1], [0], [0], [1], [0, 0, 1, 1], [], []>} : vector<5x10xf32>, vector<10x160xf32>, vector<5x160xf32> -> vector<5x160xf32>
    %42 = arith.maximumf %39, %41 : vector<5x160xf32>
    %c0_31 = arith.constant 0 : index
    %c0_32 = arith.constant 0 : index
    %43 = vector.load %arg12[%c0_31, %c0_32] : memref<160x80xf32, #tpu.memory_space<vmem>>, vector<160x80xf32>
    %cst_33 = arith.constant dense<0.000000e+00> : vector<5x80xf32>
    %44 = tpu.matmul %42, %43, %cst_33 {dimension_numbers = #tpu.dot_dimension_numbers<[1], [0], [0], [1], [0, 0, 1, 1], [], []>} : vector<5x160xf32>, vector<160x80xf32>, vector<5x80xf32> -> vector<5x80xf32>
    %c0_34 = arith.constant 0 : index
    %c0_35 = arith.constant 0 : index
    %45 = vector.load %arg13[%c0_34, %c0_35] : memref<160x80xf32, #tpu.memory_space<vmem>>, vector<160x80xf32>
    %cst_36 = arith.constant dense<0.000000e+00> : vector<5x80xf32>
    %46 = tpu.matmul %42, %45, %cst_36 {dimension_numbers = #tpu.dot_dimension_numbers<[1], [0], [0], [1], [0, 0, 1, 1], [], []>} : vector<5x160xf32>, vector<160x80xf32>, vector<5x80xf32> -> vector<5x80xf32>
    %47 = arith.maximumf %44, %46 : vector<5x80xf32>
    %48 = vector.extract_strided_slice %47 {offsets = [0, 0], sizes = [1, 80], strides = [1, 1]} : vector<5x80xf32> to vector<1x80xf32>
    %49 = vector.extract_strided_slice %47 {offsets = [1, 0], sizes = [1, 80], strides = [1, 1]} : vector<5x80xf32> to vector<1x80xf32>
    %50 = vector.extract_strided_slice %47 {offsets = [2, 0], sizes = [1, 80], strides = [1, 1]} : vector<5x80xf32> to vector<1x80xf32>
    %51 = vector.extract_strided_slice %47 {offsets = [3, 0], sizes = [1, 80], strides = [1, 1]} : vector<5x80xf32> to vector<1x80xf32>
    %52 = vector.extract_strided_slice %47 {offsets = [4, 0], sizes = [1, 80], strides = [1, 1]} : vector<5x80xf32> to vector<1x80xf32>
    %53 = tpu.concatenate %48, %49, %50, %51, %52 in 1 : vector<1x80xf32>, vector<1x80xf32>, vector<1x80xf32>, vector<1x80xf32>, vector<1x80xf32> -> vector<1x400xf32>
    %c0_37 = arith.constant 0 : index
    %c0_38 = arith.constant 0 : index
    %54 = vector.load %arg14[%c0_37, %c0_38] : memref<400x120xf32, #tpu.memory_space<vmem>>, vector<400x120xf32>
    %cst_39 = arith.constant dense<0.000000e+00> : vector<1x120xf32>
    %55 = tpu.matmul %53, %54, %cst_39 {dimension_numbers = #tpu.dot_dimension_numbers<[1], [0], [0], [1], [0, 0, 1, 1], [], []>} : vector<1x400xf32>, vector<400x120xf32>, vector<1x120xf32> -> vector<1x120xf32>
    %c0_40 = arith.constant 0 : index
    %c0_41 = arith.constant 0 : index
    %56 = vector.load %arg15[%c0_40, %c0_41] : memref<1x120xf32, #tpu.memory_space<vmem>>, vector<1x120xf32>
    %57 = arith.addf %55, %56 : vector<1x120xf32>
    %cst_42 = arith.constant 0.000000e+00 : f32
    %58 = vector.broadcast %cst_42 : f32 to vector<1x120xf32>
    %59 = arith.maximumf %57, %58 : vector<1x120xf32>
    %c0_43 = arith.constant 0 : index
    %c0_44 = arith.constant 0 : index
    %60 = vector.load %arg16[%c0_43, %c0_44] : memref<120x84xf32, #tpu.memory_space<vmem>>, vector<120x84xf32>
    %cst_45 = arith.constant dense<0.000000e+00> : vector<1x84xf32>
    %61 = tpu.matmul %59, %60, %cst_45 {dimension_numbers = #tpu.dot_dimension_numbers<[1], [0], [0], [1], [0, 0, 1, 1], [], []>} : vector<1x120xf32>, vector<120x84xf32>, vector<1x84xf32> -> vector<1x84xf32>
    %c0_46 = arith.constant 0 : index
    %c0_47 = arith.constant 0 : index
    %62 = vector.load %arg17[%c0_46, %c0_47] : memref<1x84xf32, #tpu.memory_space<vmem>>, vector<1x84xf32>
    %63 = arith.addf %61, %62 : vector<1x84xf32>
    %cst_48 = arith.constant 0.000000e+00 : f32
    %64 = vector.broadcast %cst_48 : f32 to vector<1x84xf32>
    %65 = arith.maximumf %63, %64 : vector<1x84xf32>
    %c0_49 = arith.constant 0 : index
    %c0_50 = arith.constant 0 : index
    %66 = vector.load %arg18[%c0_49, %c0_50] : memref<84x10xf32, #tpu.memory_space<vmem>>, vector<84x10xf32>
    %cst_51 = arith.constant dense<0.000000e+00> : vector<1x10xf32>
    %67 = tpu.matmul %65, %66, %cst_51 {dimension_numbers = #tpu.dot_dimension_numbers<[1], [0], [0], [1], [0, 0, 1, 1], [], []>} : vector<1x84xf32>, vector<84x10xf32>, vector<1x10xf32> -> vector<1x10xf32>
    %c0_52 = arith.constant 0 : index
    %c0_53 = arith.constant 0 : index
    %68 = vector.load %arg19[%c0_52, %c0_53] : memref<1x10xf32, #tpu.memory_space<vmem>>, vector<1x10xf32>
    %69 = arith.addf %67, %68 : vector<1x10xf32>
    %c0_54 = arith.constant 0 : index
    %c0_55 = arith.constant 0 : index
    %c0_56 = arith.constant 0 : index
    %70 = vector.load %arg20[%c0_54, %c0_55, %c0_56] : memref<1x1x10xf32, #tpu.memory_space<vmem>>, vector<1x1x10xf32>
    %71 = vector.shape_cast %70 : vector<1x1x10xf32> to vector<1x10xf32>
    %72 = vector.shape_cast %69 : vector<1x10xf32> to vector<1x1x10xf32>
    tpu.vector_store %arg20[%c0_54, %c0_55, %c0_56], %72 {strides = array<i32>} : memref<1x1x10xf32, #tpu.memory_space<vmem>>, vector<1x1x10xf32>,
    return
  }
  func.func @transform_0(%arg0: i32) -> (i32, i32, i32) {
    %c0_i32 = arith.constant 0 : i32
    %c0_i32_0 = arith.constant 0 : i32
    %c0_i32_1 = arith.constant 0 : i32
    return %arg0, %c0_i32, %c0_i32_0 : i32, i32, i32
  }
  func.func @transform_1(%arg0: i32) -> (i32, i32) {
    %c0_i32 = arith.constant 0 : i32
    %c0_i32_0 = arith.constant 0 : i32
    %c0_i32_1 = arith.constant 0 : i32
    return %c0_i32, %c0_i32_0 : i32, i32
  }
  func.func @transform_2(%arg0: i32) -> (i32, i32) {
    %c0_i32 = arith.constant 0 : i32
    %c0_i32_0 = arith.constant 0 : i32
    %c0_i32_1 = arith.constant 0 : i32
    return %c0_i32, %c0_i32_0 : i32, i32
  }
  func.func @transform_3(%arg0: i32) -> (i32, i32) {
    %c0_i32 = arith.constant 0 : i32
    %c0_i32_0 = arith.constant 0 : i32
    %c0_i32_1 = arith.constant 0 : i32
    return %c0_i32, %c0_i32_0 : i32, i32
  }
  func.func @transform_4(%arg0: i32) -> (i32, i32) {
    %c0_i32 = arith.constant 0 : i32
    %c0_i32_0 = arith.constant 0 : i32
    %c0_i32_1 = arith.constant 0 : i32
    return %c0_i32, %c0_i32_0 : i32, i32
  }
  func.func @transform_5(%arg0: i32) -> (i32, i32) {
    %c0_i32 = arith.constant 0 : i32
    %c0_i32_0 = arith.constant 0 : i32
    %c0_i32_1 = arith.constant 0 : i32
    return %c0_i32, %c0_i32_0 : i32, i32
  }
  func.func @transform_6(%arg0: i32) -> (i32, i32) {
    %c0_i32 = arith.constant 0 : i32
    %c0_i32_0 = arith.constant 0 : i32
    %c0_i32_1 = arith.constant 0 : i32
    return %c0_i32, %c0_i32_0 : i32, i32
  }
  func.func @transform_7(%arg0: i32) -> (i32, i32) {
    %c0_i32 = arith.constant 0 : i32
    %c0_i32_0 = arith.constant 0 : i32
    %c0_i32_1 = arith.constant 0 : i32
    return %c0_i32, %c0_i32_0 : i32, i32
  }
  func.func @transform_8(%arg0: i32) -> (i32, i32) {
    %c0_i32 = arith.constant 0 : i32
    %c0_i32_0 = arith.constant 0 : i32
    %c0_i32_1 = arith.constant 0 : i32
    return %c0_i32, %c0_i32_0 : i32, i32
  }
  func.func @transform_9(%arg0: i32) -> (i32, i32) {
    %c0_i32 = arith.constant 0 : i32
    %c0_i32_0 = arith.constant 0 : i32
    %c0_i32_1 = arith.constant 0 : i32
    return %c0_i32, %c0_i32_0 : i32, i32
  }
  func.func @transform_10(%arg0: i32) -> (i32, i32) {
    %c0_i32 = arith.constant 0 : i32
    %c0_i32_0 = arith.constant 0 : i32
    %c0_i32_1 = arith.constant 0 : i32
    return %c0_i32, %c0_i32_0 : i32, i32
  }
  func.func @transform_11(%arg0: i32) -> (i32, i32) {
    %c0_i32 = arith.constant 0 : i32
    %c0_i32_0 = arith.constant 0 : i32
    %c0_i32_1 = arith.constant 0 : i32
    return %c0_i32, %c0_i32_0 : i32, i32
  }
  func.func @transform_12(%arg0: i32) -> (i32, i32) {
    %c0_i32 = arith.constant 0 : i32
    %c0_i32_0 = arith.constant 0 : i32
    %c0_i32_1 = arith.constant 0 : i32
    return %c0_i32, %c0_i32_0 : i32, i32
  }
  func.func @transform_13(%arg0: i32) -> (i32, i32) {
    %c0_i32 = arith.constant 0 : i32
    %c0_i32_0 = arith.constant 0 : i32
    %c0_i32_1 = arith.constant 0 : i32
    return %c0_i32, %c0_i32_0 : i32, i32
  }
  func.func @transform_14(%arg0: i32) -> (i32, i32) {
    %c0_i32 = arith.constant 0 : i32
    %c0_i32_0 = arith.constant 0 : i32
    %c0_i32_1 = arith.constant 0 : i32
    return %c0_i32, %c0_i32_0 : i32, i32
  }
  func.func @transform_15(%arg0: i32) -> (i32, i32) {
    %c0_i32 = arith.constant 0 : i32
    %c0_i32_0 = arith.constant 0 : i32
    %c0_i32_1 = arith.constant 0 : i32
    return %c0_i32, %c0_i32_0 : i32, i32
  }
  func.func @transform_16(%arg0: i32) -> (i32, i32) {
    %c0_i32 = arith.constant 0 : i32
    %c0_i32_0 = arith.constant 0 : i32
    %c0_i32_1 = arith.constant 0 : i32
    return %c0_i32, %c0_i32_0 : i32, i32
  }
  func.func @transform_17(%arg0: i32) -> (i32, i32) {
    %c0_i32 = arith.constant 0 : i32
    %c0_i32_0 = arith.constant 0 : i32
    %c0_i32_1 = arith.constant 0 : i32
    return %c0_i32, %c0_i32_0 : i32, i32
  }
  func.func @transform_18(%arg0: i32) -> (i32, i32) {
    %c0_i32 = arith.constant 0 : i32
    %c0_i32_0 = arith.constant 0 : i32
    %c0_i32_1 = arith.constant 0 : i32
    return %c0_i32, %c0_i32_0 : i32, i32
  }
  func.func @transform_19(%arg0: i32) -> (i32, i32, i32) {
    %c0_i32 = arith.constant 0 : i32
    %c0_i32_0 = arith.constant 0 : i32
    %c0_i32_1 = arith.constant 0 : i32
    return %arg0, %c0_i32, %c0_i32_0 : i32, i32, i32
  }
}

</mosaic_0001>

<llo_original>
// kernel: simplenet_forward.1
$region0: #{simplenet_forward.1}
  #allocation0 [shape = 'u32[]', space=smem, size = 0x4, offset = 0x4, fixed_abs, tag = 'smem constant byte address 0x4 - core index']
  #allocation1 [shape = 'u32[72,128]{1,0:T(1,128)}', space=vmem, size = 0x9000, scoped, tag = 'internal scratch']
  %s0 = inlined_call_operand.vmem [shape: f32[2,32,96], index: 0, kind: input, shape index: {}]
  %s1 = inlined_call_operand.vmem [shape: f32[480,168], index: 1, kind: input, shape index: {}]
  %s2 = inlined_call_operand.vmem [shape: f32[1,168], index: 2, kind: input, shape index: {}]
  %s3 = inlined_call_operand.vmem [shape: f32[14,28], index: 3, kind: input, shape index: {}]
  %s4 = inlined_call_operand.vmem [shape: f32[14,28], index: 4, kind: input, shape index: {}]
  %s5 = inlined_call_operand.vmem [shape: f32[168,84], index: 5, kind: input, shape index: {}]
  %s6 = inlined_call_operand.vmem [shape: f32[168,84], index: 6, kind: input, shape index: {}]
  %s7 = inlined_call_operand.vmem [shape: f32[420,160], index: 7, kind: input, shape index: {}]
  %s8 = inlined_call_operand.vmem [shape: f32[1,160], index: 8, kind: input, shape index: {}]
  %s9 = inlined_call_operand.vmem [shape: f32[5,10], index: 9, kind: input, shape index: {}]
  %s10 = inlined_call_operand.vmem [shape: f32[5,10], index: 10, kind: input, shape index: {}]
  %s11 = inlined_call_operand.vmem [shape: f32[160,80], index: 11, kind: input, shape index: {}]
  %s12 = inlined_call_operand.vmem [shape: f32[160,80], index: 12, kind: input, shape index: {}]
  %s13 = inlined_call_operand.vmem [shape: f32[400,120], index: 13, kind: input, shape index: {}]
  %s14 = inlined_call_operand.vmem [shape: f32[1,120], index: 14, kind: input, shape index: {}]
  %s15 = inlined_call_operand.vmem [shape: f32[120,84], index: 15, kind: input, shape index: {}]
  %s16 = inlined_call_operand.vmem [shape: f32[1,84], index: 16, kind: input, shape index: {}]
  %s17 = inlined_call_operand.vmem [shape: f32[84,10], index: 17, kind: input, shape index: {}]
  %s18 = inlined_call_operand.vmem [shape: f32[1,10], index: 18, kind: input, shape index: {}]
  %s19 = inlined_call_operand.hbm [shape: f32[2,1,10], index: 19, kind: output, shape index: {}]
  %s20 = sld [smem:[#allocation0]]
  $region109: #{simplenet_forward.1} parent=0
    _
  %s22 = ssub.s32 1, %s20
  %s23 = scalar_select 0, %s22, %s20
  $region1: #{simplenet_forward.1} parent=0
    #allocation2 [shape = 'u8[1024]{0}', space=vmem, size = 0x400, scoped, tag = 'output window, operand 0']
    #allocation3 [shape = 's32[2]{0}', space=sflag, size = 0x8, scoped, tag = 'scoped memory for simplenet_forward.1']
    %24 = vsyncpa [#allocation3], 0
    %s25 = scalar_lea.sflag [#allocation3], 1
    %26 = vsyncpa %s25, 0
    loop: start=0, step=1, limit=4
    $region2: #{simplenet_forward.1} parent=1 // loop_pre_header
      _
    $region3: #{simplenet_forward.1} parent=1 // loop_header
      %s28 = sphi 0, %s32
      %p29 = scmp.ge.s32.totalorder %s28, 4
      %s38 = sphi 0, %s40
      %s41 = sphi 0, %s38
      %s42 = sphi 0, %s41
      %s58 = sphi 0, %s42
      %s62 = sphi 0, %s62
      %s64 = sphi 0, %s62
      %s65 = sphi 0, %s64
      %s79 = sphi 0, %s65
      %s83 = sphi 0, %s83
      %s85 = sphi 0, %s83
      %s86 = sphi 0, %s85
      %s100 = sphi 0, %s86
      %s104 = sphi 0, %s104
      %s106 = sphi 0, %s104
      %s107 = sphi 0, %s106
      %s121 = sphi 0, %s107
      %s125 = sphi 0, %s125
      %s127 = sphi 0, %s125
      %s128 = sphi 0, %s127
      %s142 = sphi 0, %s128
      %s146 = sphi 0, %s146
      %s148 = sphi 0, %s146
      %s149 = sphi 0, %s148
      %s163 = sphi 0, %s149
      %s167 = sphi 0, %s167
      %s169 = sphi 0, %s167
      %s170 = sphi 0, %s169
      %s184 = sphi 0, %s170
      %s188 = sphi 0, %s188
      %s190 = sphi 0, %s188
      %s191 = sphi 0, %s190
      %s205 = sphi 0, %s191
      %s209 = sphi 0, %s209
      %s211 = sphi 0, %s209
      %s212 = sphi 0, %s211
      %s226 = sphi 0, %s212
      %s230 = sphi 0, %s230
      %s232 = sphi 0, %s230
      %s233 = sphi 0, %s232
      %s247 = sphi 0, %s233
      %s251 = sphi 0, %s251
      %s253 = sphi 0, %s251
      %s254 = sphi 0, %s253
      %s268 = sphi 0, %s254
      %s272 = sphi 0, %s272
      %s274 = sphi 0, %s272
      %s275 = sphi 0, %s274
      %s289 = sphi 0, %s275
      %s293 = sphi 0, %s293
      %s295 = sphi 0, %s293
      %s296 = sphi 0, %s295
      %s310 = sphi 0, %s296
      %s314 = sphi 0, %s314
      %s316 = sphi 0, %s314
      %s317 = sphi 0, %s316
      %s331 = sphi 0, %s317
      %s335 = sphi 0, %s335
      %s337 = sphi 0, %s335
      %s338 = sphi 0, %s337
      %s352 = sphi 0, %s338
      %s356 = sphi 0, %s356
      %s358 = sphi 0, %s356
      %s359 = sphi 0, %s358
      %s373 = sphi 0, %s359
      %s377 = sphi 0, %s377
      %s379 = sphi 0, %s377
      %s380 = sphi 0, %s379
      %s394 = sphi 0, %s380
      %s398 = sphi 0, %s398
      %s400 = sphi 0, %s398
      %s401 = sphi 0, %s400
      %s415 = sphi 0, %s401
      %s419 = sphi 0, %s419
      %s421 = sphi 0, %s419
      %s422 = sphi 0, %s421
      %s436 = sphi 0, %s422
      %s442 = sphi 0, %s444
      %s445 = sphi 0, %s442
      %s446 = sphi 0, %s445
      %s462 = sphi 0, %s446
    $region4: #{simplenet_forward.1} parent=1 // loop_header_branch
      %31 = sbr.rel (%p29) target = $region8
    $region5: #{simplenet_forward.1} parent=1 // loop_body
      %s33 = ssub.s32 %s28, 1
      %s34 = ssub.s32 %s28, 2
      %s35 = sadd.s32 %s28, 1
      %s36 = ssub.s32 %s28, %s35
      %p37 = scmp.eq.s32.totalorder %s36, 0
      %s39 = sadd.s32 %s38, 1
      %s40 = scalar_select %p37, %s38, %s39
      %p43 = pneg %p37
      %p44 = scmp.eq.s32.totalorder %s28, 1
      %p45 = por %p43, %p44
      %p46 = scmp.ne.s32.totalorder %s38, %s41
      %p47 = scmp.eq.s32.totalorder %s28, 0
      %p48 = por %p46, %p47
      %p49 = scmp.ne.s32.totalorder %s38, %s41
      %p50 = scmp.eq.s32.totalorder %s33, 1
      %p51 = por %p49, %p50
      %p52 = scmp.ne.s32.totalorder %s41, %s42
      %p53 = scmp.eq.s32.totalorder %s33, 0
      %p54 = por %p52, %p53
      %p55 = scmp.ne.s32.totalorder %s41, %s42
      %p56 = scmp.eq.s32.totalorder %s34, 1
      %p57 = por %p55, %p56
      %p59 = scmp.ne.s32.totalorder %s42, %s58
      %p60 = scmp.eq.s32.totalorder %s34, 0
      %p61 = por %p59, %p60
      %s63 = sadd.s32 %s62, 1
      %p66 = scmp.eq.s32.totalorder %s28, 1
      %p67 = scmp.ne.s32.totalorder %s62, %s64
      %p68 = scmp.eq.s32.totalorder %s28, 0
      %p69 = por %p67, %p68
      %p70 = scmp.ne.s32.totalorder %s62, %s64
      %p71 = scmp.eq.s32.totalorder %s33, 1
      %p72 = por %p70, %p71
      %p73 = scmp.ne.s32.totalorder %s64, %s65
      %p74 = scmp.eq.s32.totalorder %s33, 0
      %p75 = por %p73, %p74
      %p76 = scmp.ne.s32.totalorder %s64, %s65
      %p77 = scmp.eq.s32.totalorder %s34, 1
      %p78 = por %p76, %p77
      %p80 = scmp.ne.s32.totalorder %s65, %s79
      %p81 = scmp.eq.s32.totalorder %s34, 0
      %p82 = por %p80, %p81
      %s84 = sadd.s32 %s83, 1
      %p87 = scmp.eq.s32.totalorder %s28, 1
      %p88 = scmp.ne.s32.totalorder %s83, %s85
      %p89 = scmp.eq.s32.totalorder %s28, 0
      %p90 = por %p88, %p89
      %p91 = scmp.ne.s32.totalorder %s83, %s85
      %p92 = scmp.eq.s32.totalorder %s33, 1
      %p93 = por %p91, %p92
      %p94 = scmp.ne.s32.totalorder %s85, %s86
      %p95 = scmp.eq.s32.totalorder %s33, 0
      %p96 = por %p94, %p95
      %p97 = scmp.ne.s32.totalorder %s85, %s86
      %p98 = scmp.eq.s32.totalorder %s34, 1
      %p99 = por %p97, %p98
      %p101 = scmp.ne.s32.totalorder %s86, %s100
      %p102 = scmp.eq.s32.totalorder %s34, 0
      %p103 = por %p101, %p102
      %s105 = sadd.s32 %s104, 1
      %p108 = scmp.eq.s32.totalorder %s28, 1
      %p109 = scmp.ne.s32.totalorder %s104, %s106
      %p110 = scmp.eq.s32.totalorder %s28, 0
      %p111 = por %p109, %p110
      %p112 = scmp.ne.s32.totalorder %s104, %s106
      %p113 = scmp.eq.s32.totalorder %s33, 1
      %p114 = por %p112, %p113
      %p115 = scmp.ne.s32.totalorder %s106, %s107
      %p116 = scmp.eq.s32.totalorder %s33, 0
      %p117 = por %p115, %p116
      %p118 = scmp.ne.s32.totalorder %s106, %s107
      %p119 = scmp.eq.s32.totalorder %s34, 1
      %p120 = por %p118, %p119
      %p122 = scmp.ne.s32.totalorder %s107, %s121
      %p123 = scmp.eq.s32.totalorder %s34, 0
      %p124 = por %p122, %p123
      %s126 = sadd.s32 %s125, 1
      %p129 = scmp.eq.s32.totalorder %s28, 1
      %p130 = scmp.ne.s32.totalorder %s125, %s127
      %p131 = scmp.eq.s32.totalorder %s28, 0
      %p132 = por %p130, %p131
      %p133 = scmp.ne.s32.totalorder %s125, %s127
      %p134 = scmp.eq.s32.totalorder %s33, 1
      %p135 = por %p133, %p134
      %p136 = scmp.ne.s32.totalorder %s127, %s128
      %p137 = scmp.eq.s32.totalorder %s33, 0
      %p138 = por %p136, %p137
      %p139 = scmp.ne.s32.totalorder %s127, %s128
      %p140 = scmp.eq.s32.totalorder %s34, 1
      %p141 = por %p139, %p140
      %p143 = scmp.ne.s32.totalorder %s128, %s142
      %p144 = scmp.eq.s32.totalorder %s34, 0
      %p145 = por %p143, %p144
      %s147 = sadd.s32 %s146, 1
      %p150 = scmp.eq.s32.totalorder %s28, 1
      %p151 = scmp.ne.s32.totalorder %s146, %s148
      %p152 = scmp.eq.s32.totalorder %s28, 0
      %p153 = por %p151, %p152
      %p154 = scmp.ne.s32.totalorder %s146, %s148
      %p155 = scmp.eq.s32.totalorder %s33, 1
      %p156 = por %p154, %p155
      %p157 = scmp.ne.s32.totalorder %s148, %s149
      %p158 = scmp.eq.s32.totalorder %s33, 0
      %p159 = por %p157, %p158
      %p160 = scmp.ne.s32.totalorder %s148, %s149
      %p161 = scmp.eq.s32.totalorder %s34, 1
      %p162 = por %p160, %p161
      %p164 = scmp.ne.s32.totalorder %s149, %s163
      %p165 = scmp.eq.s32.totalorder %s34, 0
      %p166 = por %p164, %p165
      %s168 = sadd.s32 %s167, 1
      %p171 = scmp.eq.s32.totalorder %s28, 1
      %p172 = scmp.ne.s32.totalorder %s167, %s169
      %p173 = scmp.eq.s32.totalorder %s28, 0
      %p174 = por %p172, %p173
      %p175 = scmp.ne.s32.totalorder %s167, %s169
      %p176 = scmp.eq.s32.totalorder %s33, 1
      %p177 = por %p175, %p176
      %p178 = scmp.ne.s32.totalorder %s169, %s170
      %p179 = scmp.eq.s32.totalorder %s33, 0
      %p180 = por %p178, %p179
      %p181 = scmp.ne.s32.totalorder %s169, %s170
      %p182 = scmp.eq.s32.totalorder %s34, 1
      %p183 = por %p181, %p182
      %p185 = scmp.ne.s32.totalorder %s170, %s184
      %p186 = scmp.eq.s32.totalorder %s34, 0
      %p187 = por %p185, %p186
      %s189 = sadd.s32 %s188, 1
      %p192 = scmp.eq.s32.totalorder %s28, 1
      %p193 = scmp.ne.s32.totalorder %s188, %s190
      %p194 = scmp.eq.s32.totalorder %s28, 0
      %p195 = por %p193, %p194
      %p196 = scmp.ne.s32.totalorder %s188, %s190
      %p197 = scmp.eq.s32.totalorder %s33, 1
      %p198 = por %p196, %p197
      %p199 = scmp.ne.s32.totalorder %s190, %s191
      %p200 = scmp.eq.s32.totalorder %s33, 0
      %p201 = por %p199, %p200
      %p202 = scmp.ne.s32.totalorder %s190, %s191
      %p203 = scmp.eq.s32.totalorder %s34, 1
      %p204 = por %p202, %p203
      %p206 = scmp.ne.s32.totalorder %s191, %s205
      %p207 = scmp.eq.s32.totalorder %s34, 0
      %p208 = por %p206, %p207
      %s210 = sadd.s32 %s209, 1
      %p213 = scmp.eq.s32.totalorder %s28, 1
      %p214 = scmp.ne.s32.totalorder %s209, %s211
      %p215 = scmp.eq.s32.totalorder %s28, 0
      %p216 = por %p214, %p215
      %p217 = scmp.ne.s32.totalorder %s209, %s211
      %p218 = scmp.eq.s32.totalorder %s33, 1
      %p219 = por %p217, %p218
      %p220 = scmp.ne.s32.totalorder %s211, %s212
      %p221 = scmp.eq.s32.totalorder %s33, 0
      %p222 = por %p220, %p221
      %p223 = scmp.ne.s32.totalorder %s211, %s212
      %p224 = scmp.eq.s32.totalorder %s34, 1
      %p225 = por %p223, %p224
      %p227 = scmp.ne.s32.totalorder %s212, %s226
      %p228 = scmp.eq.s32.totalorder %s34, 0
      %p229 = por %p227, %p228
      %s231 = sadd.s32 %s230, 1
      %p234 = scmp.eq.s32.totalorder %s28, 1
      %p235 = scmp.ne.s32.totalorder %s230, %s232
      %p236 = scmp.eq.s32.totalorder %s28, 0
      %p237 = por %p235, %p236
      %p238 = scmp.ne.s32.totalorder %s230, %s232
      %p239 = scmp.eq.s32.totalorder %s33, 1
      %p240 = por %p238, %p239
      %p241 = scmp.ne.s32.totalorder %s232, %s233
      %p242 = scmp.eq.s32.totalorder %s33, 0
      %p243 = por %p241, %p242
      %p244 = scmp.ne.s32.totalorder %s232, %s233
      %p245 = scmp.eq.s32.totalorder %s34, 1
      %p246 = por %p244, %p245
      %p248 = scmp.ne.s32.totalorder %s233, %s247
      %p249 = scmp.eq.s32.totalorder %s34, 0
      %p250 = por %p248, %p249
      %s252 = sadd.s32 %s251, 1
      %p255 = scmp.eq.s32.totalorder %s28, 1
      %p256 = scmp.ne.s32.totalorder %s251, %s253
      %p257 = scmp.eq.s32.totalorder %s28, 0
      %p258 = por %p256, %p257
      %p259 = scmp.ne.s32.totalorder %s251, %s253
      %p260 = scmp.eq.s32.totalorder %s33, 1
      %p261 = por %p259, %p260
      %p262 = scmp.ne.s32.totalorder %s253, %s254
      %p263 = scmp.eq.s32.totalorder %s33, 0
      %p264 = por %p262, %p263
      %p265 = scmp.ne.s32.totalorder %s253, %s254
      %p266 = scmp.eq.s32.totalorder %s34, 1
      %p267 = por %p265, %p266
      %p269 = scmp.ne.s32.totalorder %s254, %s268
      %p270 = scmp.eq.s32.totalorder %s34, 0
      %p271 = por %p269, %p270
      %s273 = sadd.s32 %s272, 1
      %p276 = scmp.eq.s32.totalorder %s28, 1
      %p277 = scmp.ne.s32.totalorder %s272, %s274
      %p278 = scmp.eq.s32.totalorder %s28, 0
      %p279 = por %p277, %p278
      %p280 = scmp.ne.s32.totalorder %s272, %s274
      %p281 = scmp.eq.s32.totalorder %s33, 1
      %p282 = por %p280, %p281
      %p283 = scmp.ne.s32.totalorder %s274, %s275
      %p284 = scmp.eq.s32.totalorder %s33, 0
      %p285 = por %p283, %p284
      %p286 = scmp.ne.s32.totalorder %s274, %s275
      %p287 = scmp.eq.s32.totalorder %s34, 1
      %p288 = por %p286, %p287
      %p290 = scmp.ne.s32.totalorder %s275, %s289
      %p291 = scmp.eq.s32.totalorder %s34, 0
      %p292 = por %p290, %p291
      %s294 = sadd.s32 %s293, 1
      %p297 = scmp.eq.s32.totalorder %s28, 1
      %p298 = scmp.ne.s32.totalorder %s293, %s295
      %p299 = scmp.eq.s32.totalorder %s28, 0
      %p300 = por %p298, %p299
      %p301 = scmp.ne.s32.totalorder %s293, %s295
      %p302 = scmp.eq.s32.totalorder %s33, 1
      %p303 = por %p301, %p302
      %p304 = scmp.ne.s32.totalorder %s295, %s296
      %p305 = scmp.eq.s32.totalorder %s33, 0
      %p306 = por %p304, %p305
      %p307 = scmp.ne.s32.totalorder %s295, %s296
      %p308 = scmp.eq.s32.totalorder %s34, 1
      %p309 = por %p307, %p308
      %p311 = scmp.ne.s32.totalorder %s296, %s310
      %p312 = scmp.eq.s32.totalorder %s34, 0
      %p313 = por %p311, %p312
      %s315 = sadd.s32 %s314, 1
      %p318 = scmp.eq.s32.totalorder %s28, 1
      %p319 = scmp.ne.s32.totalorder %s314, %s316
      %p320 = scmp.eq.s32.totalorder %s28, 0
      %p321 = por %p319, %p320
      %p322 = scmp.ne.s32.totalorder %s314, %s316
      %p323 = scmp.eq.s32.totalorder %s33, 1
      %p324 = por %p322, %p323
      %p325 = scmp.ne.s32.totalorder %s316, %s317
      %p326 = scmp.eq.s32.totalorder %s33, 0
      %p327 = por %p325, %p326
      %p328 = scmp.ne.s32.totalorder %s316, %s317
      %p329 = scmp.eq.s32.totalorder %s34, 1
      %p330 = por %p328, %p329
      %p332 = scmp.ne.s32.totalorder %s317, %s331
      %p333 = scmp.eq.s32.totalorder %s34, 0
      %p334 = por %p332, %p333
      %s336 = sadd.s32 %s335, 1
      %p339 = scmp.eq.s32.totalorder %s28, 1
      %p340 = scmp.ne.s32.totalorder %s335, %s337
      %p341 = scmp.eq.s32.totalorder %s28, 0
      %p342 = por %p340, %p341
      %p343 = scmp.ne.s32.totalorder %s335, %s337
      %p344 = scmp.eq.s32.totalorder %s33, 1
      %p345 = por %p343, %p344
      %p346 = scmp.ne.s32.totalorder %s337, %s338
      %p347 = scmp.eq.s32.totalorder %s33, 0
      %p348 = por %p346, %p347
      %p349 = scmp.ne.s32.totalorder %s337, %s338
      %p350 = scmp.eq.s32.totalorder %s34, 1
      %p351 = por %p349, %p350
      %p353 = scmp.ne.s32.totalorder %s338, %s352
      %p354 = scmp.eq.s32.totalorder %s34, 0
      %p355 = por %p353, %p354
      %s357 = sadd.s32 %s356, 1
      %p360 = scmp.eq.s32.totalorder %s28, 1
      %p361 = scmp.ne.s32.totalorder %s356, %s358
      %p362 = scmp.eq.s32.totalorder %s28, 0
      %p363 = por %p361, %p362
      %p364 = scmp.ne.s32.totalorder %s356, %s358
      %p365 = scmp.eq.s32.totalorder %s33, 1
      %p366 = por %p364, %p365
      %p367 = scmp.ne.s32.totalorder %s358, %s359
      %p368 = scmp.eq.s32.totalorder %s33, 0
      %p369 = por %p367, %p368
      %p370 = scmp.ne.s32.totalorder %s358, %s359
      %p371 = scmp.eq.s32.totalorder %s34, 1
      %p372 = por %p370, %p371
      %p374 = scmp.ne.s32.totalorder %s359, %s373
      %p375 = scmp.eq.s32.totalorder %s34, 0
      %p376 = por %p374, %p375
      %s378 = sadd.s32 %s377, 1
      %p381 = scmp.eq.s32.totalorder %s28, 1
      %p382 = scmp.ne.s32.totalorder %s377, %s379
      %p383 = scmp.eq.s32.totalorder %s28, 0
      %p384 = por %p382, %p383
      %p385 = scmp.ne.s32.totalorder %s377, %s379
      %p386 = scmp.eq.s32.totalorder %s33, 1
      %p387 = por %p385, %p386
      %p388 = scmp.ne.s32.totalorder %s379, %s380
      %p389 = scmp.eq.s32.totalorder %s33, 0
      %p390 = por %p388, %p389
      %p391 = scmp.ne.s32.totalorder %s379, %s380
      %p392 = scmp.eq.s32.totalorder %s34, 1
      %p393 = por %p391, %p392
      %p395 = scmp.ne.s32.totalorder %s380, %s394
      %p396 = scmp.eq.s32.totalorder %s34, 0
      %p397 = por %p395, %p396
      %s399 = sadd.s32 %s398, 1
      %p402 = scmp.eq.s32.totalorder %s28, 1
      %p403 = scmp.ne.s32.totalorder %s398, %s400
      %p404 = scmp.eq.s32.totalorder %s28, 0
      %p405 = por %p403, %p404
      %p406 = scmp.ne.s32.totalorder %s398, %s400
      %p407 = scmp.eq.s32.totalorder %s33, 1
      %p408 = por %p406, %p407
      %p409 = scmp.ne.s32.totalorder %s400, %s401
      %p410 = scmp.eq.s32.totalorder %s33, 0
      %p411 = por %p409, %p410
      %p412 = scmp.ne.s32.totalorder %s400, %s401
      %p413 = scmp.eq.s32.totalorder %s34, 1
      %p414 = por %p412, %p413
      %p416 = scmp.ne.s32.totalorder %s401, %s415
      %p417 = scmp.eq.s32.totalorder %s34, 0
      %p418 = por %p416, %p417
      %s420 = sadd.s32 %s419, 1
      %p423 = scmp.eq.s32.totalorder %s28, 1
      %p424 = scmp.ne.s32.totalorder %s419, %s421
      %p425 = scmp.eq.s32.totalorder %s28, 0
      %p426 = por %p424, %p425
      %p427 = scmp.ne.s32.totalorder %s419, %s421
      %p428 = scmp.eq.s32.totalorder %s33, 1
      %p429 = por %p427, %p428
      %p430 = scmp.ne.s32.totalorder %s421, %s422
      %p431 = scmp.eq.s32.totalorder %s33, 0
      %p432 = por %p430, %p431
      %p433 = scmp.ne.s32.totalorder %s421, %s422
      %p434 = scmp.eq.s32.totalorder %s34, 1
      %p435 = por %p433, %p434
      %p437 = scmp.ne.s32.totalorder %s422, %s436
      %p438 = scmp.eq.s32.totalorder %s34, 0
      %p439 = por %p437, %p438
      %s440 = ssub.s32 %s28, %s35
      %p441 = scmp.eq.s32.totalorder %s440, 0
      %s443 = sadd.s32 %s442, 1
      %s444 = scalar_select %p441, %s442, %s443
      %p447 = pneg %p441
      %p448 = scmp.eq.s32.totalorder %s28, 1
      %p449 = por %p447, %p448
      %p450 = scmp.ne.s32.totalorder %s442, %s445
      %p451 = scmp.eq.s32.totalorder %s28, 0
      %p452 = por %p450, %p451
      %p453 = scmp.ne.s32.totalorder %s442, %s445
      %p454 = scmp.eq.s32.totalorder %s33, 1
      %p455 = por %p453, %p454
      %p456 = scmp.ne.s32.totalorder %s445, %s446
      %p457 = scmp.eq.s32.totalorder %s33, 0
      %p458 = por %p456, %p457
      %p459 = scmp.ne.s32.totalorder %s445, %s446
      %p460 = scmp.eq.s32.totalorder %s34, 1
      %p461 = por %p459, %p460
      %p463 = scmp.ne.s32.totalorder %s446, %s462
      %p464 = scmp.eq.s32.totalorder %s34, 0
      %p465 = por %p463, %p464
      %p466 = scmp.le.s32.totalorder 1, %s28
      %p467 = scmp.lt.s32.totalorder %s28, 3
      %p468 = pnand %p466, %p467
      %p469 = pneg %p468
      // Predicated region
      $region9: #{simplenet_forward.1} parent=5 // pred_check
        _
      $region10: #{simplenet_forward.1} parent=5 // pred_check_branch
        %471 = sbr.rel (%p468) target = $region12
      $region11: #{simplenet_forward.1} parent=5 // pred_region
        %s472 = ssub.s32 %s28, 1
        // Predicated region
        $region13: #{simplenet_forward.1} parent=11 // pred_check
          %p473 = pneg %p75
        $region14: #{simplenet_forward.1} parent=11 // pred_check_branch
          %475 = sbr.rel (%p473) target = $region16
        $region15: #{simplenet_forward.1} parent=11 // pred_region
          _
        $region16: #{simplenet_forward.1} parent=11 // pred_fallthru
          _
        // Predicated region
        $region17: #{simplenet_forward.1} parent=11 // pred_check
          %p476 = pneg %p96
        $region18: #{simplenet_forward.1} parent=11 // pred_check_branch
          %478 = sbr.rel (%p476) target = $region20
        $region19: #{simplenet_forward.1} parent=11 // pred_region
          _
        $region20: #{simplenet_forward.1} parent=11 // pred_fallthru
          _
        // Predicated region
        $region21: #{simplenet_forward.1} parent=11 // pred_check
          %p479 = pneg %p117
        $region22: #{simplenet_forward.1} parent=11 // pred_check_branch
          %481 = sbr.rel (%p479) target = $region24
        $region23: #{simplenet_forward.1} parent=11 // pred_region
          _
        $region24: #{simplenet_forward.1} parent=11 // pred_fallthru
          _
        // Predicated region
        $region25: #{simplenet_forward.1} parent=11 // pred_check
          %p482 = pneg %p138
        $region26: #{simplenet_forward.1} parent=11 // pred_check_branch
          %484 = sbr.rel (%p482) target = $region28
        $region27: #{simplenet_forward.1} parent=11 // pred_region
          _
        $region28: #{simplenet_forward.1} parent=11 // pred_fallthru
          _
        // Predicated region
        $region29: #{simplenet_forward.1} parent=11 // pred_check
          %p485 = pneg %p159
        $region30: #{simplenet_forward.1} parent=11 // pred_check_branch
          %487 = sbr.rel (%p485) target = $region32
        $region31: #{simplenet_forward.1} parent=11 // pred_region
          _
        $region32: #{simplenet_forward.1} parent=11 // pred_fallthru
          _
        // Predicated region
        $region33: #{simplenet_forward.1} parent=11 // pred_check
          %p488 = pneg %p180
        $region34: #{simplenet_forward.1} parent=11 // pred_check_branch
          %490 = sbr.rel (%p488) target = $region36
        $region35: #{simplenet_forward.1} parent=11 // pred_region
          _
        $region36: #{simplenet_forward.1} parent=11 // pred_fallthru
          _
        // Predicated region
        $region37: #{simplenet_forward.1} parent=11 // pred_check
          %p491 = pneg %p201
        $region38: #{simplenet_forward.1} parent=11 // pred_check_branch
          %493 = sbr.rel (%p491) target = $region40
        $region39: #{simplenet_forward.1} parent=11 // pred_region
          _
        $region40: #{simplenet_forward.1} parent=11 // pred_fallthru
          _
        // Predicated region
        $region41: #{simplenet_forward.1} parent=11 // pred_check
          %p494 = pneg %p222
        $region42: #{simplenet_forward.1} parent=11 // pred_check_branch
          %496 = sbr.rel (%p494) target = $region44
        $region43: #{simplenet_forward.1} parent=11 // pred_region
          _
        $region44: #{simplenet_forward.1} parent=11 // pred_fallthru
          _
        // Predicated region
        $region45: #{simplenet_forward.1} parent=11 // pred_check
          %p497 = pneg %p243
        $region46: #{simplenet_forward.1} parent=11 // pred_check_branch
          %499 = sbr.rel (%p497) target = $region48
        $region47: #{simplenet_forward.1} parent=11 // pred_region
          _
        $region48: #{simplenet_forward.1} parent=11 // pred_fallthru
          _
        // Predicated region
        $region49: #{simplenet_forward.1} parent=11 // pred_check
          %p500 = pneg %p264
        $region50: #{simplenet_forward.1} parent=11 // pred_check_branch
          %502 = sbr.rel (%p500) target = $region52
        $region51: #{simplenet_forward.1} parent=11 // pred_region
          _
        $region52: #{simplenet_forward.1} parent=11 // pred_fallthru
          _
        // Predicated region
        $region53: #{simplenet_forward.1} parent=11 // pred_check
          %p503 = pneg %p285
        $region54: #{simplenet_forward.1} parent=11 // pred_check_branch
          %505 = sbr.rel (%p503) target = $region56
        $region55: #{simplenet_forward.1} parent=11 // pred_region
          _
        $region56: #{simplenet_forward.1} parent=11 // pred_fallthru
          _
        // Predicated region
        $region57: #{simplenet_forward.1} parent=11 // pred_check
          %p506 = pneg %p306
        $region58: #{simplenet_forward.1} parent=11 // pred_check_branch
          %508 = sbr.rel (%p506) target = $region60
        $region59: #{simplenet_forward.1} parent=11 // pred_region
          _
        $region60: #{simplenet_forward.1} parent=11 // pred_fallthru
          _
        // Predicated region
        $region61: #{simplenet_forward.1} parent=11 // pred_check
          %p509 = pneg %p327
        $region62: #{simplenet_forward.1} parent=11 // pred_check_branch
          %511 = sbr.rel (%p509) target = $region64
        $region63: #{simplenet_forward.1} parent=11 // pred_region
          _
        $region64: #{simplenet_forward.1} parent=11 // pred_fallthru
          _
        // Predicated region
        $region65: #{simplenet_forward.1} parent=11 // pred_check
          %p512 = pneg %p348
        $region66: #{simplenet_forward.1} parent=11 // pred_check_branch
          %514 = sbr.rel (%p512) target = $region68
        $region67: #{simplenet_forward.1} parent=11 // pred_region
          _
        $region68: #{simplenet_forward.1} parent=11 // pred_fallthru
          _
        // Predicated region
        $region69: #{simplenet_forward.1} parent=11 // pred_check
          %p515 = pneg %p369
        $region70: #{simplenet_forward.1} parent=11 // pred_check_branch
          %517 = sbr.rel (%p515) target = $region72
        $region71: #{simplenet_forward.1} parent=11 // pred_region
          _
        $region72: #{simplenet_forward.1} parent=11 // pred_fallthru
          _
        // Predicated region
        $region73: #{simplenet_forward.1} parent=11 // pred_check
          %p518 = pneg %p390
        $region74: #{simplenet_forward.1} parent=11 // pred_check_branch
          %520 = sbr.rel (%p518) target = $region76
        $region75: #{simplenet_forward.1} parent=11 // pred_region
          _
        $region76: #{simplenet_forward.1} parent=11 // pred_fallthru
          _
        // Predicated region
        $region77: #{simplenet_forward.1} parent=11 // pred_check
          %p521 = pneg %p411
        $region78: #{simplenet_forward.1} parent=11 // pred_check_branch
          %523 = sbr.rel (%p521) target = $region80
        $region79: #{simplenet_forward.1} parent=11 // pred_region
          _
        $region80: #{simplenet_forward.1} parent=11 // pred_fallthru
          _
        // Predicated region
        $region81: #{simplenet_forward.1} parent=11 // pred_check
          %p524 = pneg %p432
        $region82: #{simplenet_forward.1} parent=11 // pred_check_branch
          %526 = sbr.rel (%p524) target = $region84
        $region83: #{simplenet_forward.1} parent=11 // pred_region
          _
        $region84: #{simplenet_forward.1} parent=11 // pred_fallthru
          _
      $region12: #{simplenet_forward.1} parent=5 // pred_fallthru
        _
      %p527 = scmp.lt.s32.totalorder %s28, 2
      // Predicated region
      $region85: #{simplenet_forward.1} parent=5 // pred_check
        %p528 = pneg %p527
      $region86: #{simplenet_forward.1} parent=5 // pred_check_branch
        %530 = sbr.rel (%p528) target = $region88
      $region87: #{simplenet_forward.1} parent=5 // pred_region
        // Predicated region
        $region89: #{simplenet_forward.1} parent=87 // pred_check
          %p531 = pneg %p48
        $region90: #{simplenet_forward.1} parent=87 // pred_check_branch
          %533 = sbr.rel (%p531) target = $region92
        $region91: #{simplenet_forward.1} parent=87 // pred_region
          %p534 = scmp.lt.s32.totalorder %s28, 1
          %s535 = scalar_select %p534, %s28, 1
          %s536 = smul.addr %s535, 4
          %s537 = smul.addr %s536, 8
          %s538 = scalar_lea.vmem %s0, %s537
        $region92: #{simplenet_forward.1} parent=87 // pred_fallthru
          _
      $region88: #{simplenet_forward.1} parent=5 // pred_fallthru
        _
      %p539 = scmp.le.s32.totalorder 1, %s28
      %p540 = scmp.lt.s32.totalorder %s28, 3
      %p541 = pnand %p539, %p540
      %p542 = pneg %p541
      // Predicated region
      $region93: #{simplenet_forward.1} parent=5 // pred_check
        _
      $region94: #{simplenet_forward.1} parent=5 // pred_check_branch
        %544 = sbr.rel (%p541) target = $region96
      $region95: #{simplenet_forward.1} parent=5 // pred_region
        %s545 = ssub.s32 %s28, 1
        %p546 = scmp.lt.s32.totalorder %s33, 1
        %s547 = scalar_select %p546, %s33, 1
        %s548 = smul.addr %s547, 4
        %s549 = smul.addr %s548, 8
        %s550 = scalar_lea.vmem %s0, %s549
        %p551 = pneg %p54
        %p552 = pneg %p51
        %p553 = pneg %p75
        %p554 = pneg %p72
        %p555 = pneg %p96
        %p556 = pneg %p93
        %p557 = pneg %p117
        %p558 = pneg %p114
        %p559 = pneg %p138
        %p560 = pneg %p135
        %p561 = pneg %p159
        %p562 = pneg %p156
        %p563 = pneg %p180
        %p564 = pneg %p177
        %p565 = pneg %p201
        %p566 = pneg %p198
        %p567 = pneg %p222
        %p568 = pneg %p219
        %p569 = pneg %p243
        %p570 = pneg %p240
        %p571 = pneg %p264
        %p572 = pneg %p261
        %p573 = pneg %p285
        %p574 = pneg %p282
        %p575 = pneg %p306
        %p576 = pneg %p303
        %p577 = pneg %p327
        %p578 = pneg %p324
        %p579 = pneg %p348
        %p580 = pneg %p345
        %p581 = pneg %p369
        %p582 = pneg %p366
        %p583 = pneg %p390
        %p584 = pneg %p387
        %p585 = pneg %p411
        %p586 = pneg %p408
        %p587 = pneg %p432
        %p588 = pneg %p429
        %p589 = pneg %p458
        %p590 = pneg %p455
        %s591 = sand.u32 %s445, 1
        %s592 = scalar_lea.sflag [#allocation3], %s591
        %s593 = sand.u32 %s445, 1
        %s594 = scalar_lea.vmem [#allocation2], %s593
        %p595 = scmp.lt.s32.totalorder %s33, 1
        %s596 = scalar_select %p595, %s33, 1
        %s597 = smul.addr %s596, 4
        %s598 = smul.addr %s597, 8
        %s599 = scalar_lea.vmem %s0, %s598
        %v600 = vld [vmem:[%s599] sm:$0xff]
        %v601 = vld [vmem:[%s599 + $0x8] sm:$0xff]
        %v602 = vld [vmem:[%s599 + $0x10] sm:$0xff]
        %v603 = vld [vmem:[%s599 + $0x18] sm:$0xff]
        %vm608 = vcmask 1046528
        %v609 = vrot.slane %v600, 1
        %v610 = vrot.slane %v601, 1
        %v611 = vsel %vm608, %v609, %v610
        %v612 = vrot.slane %v602, 1
        %v613 = vsel %vm608, %v610, %v612
        %v614 = vrot.slane %v603, 1
        %v615 = vsel %vm608, %v612, %v614
        %616 = vrot.lane.b32.xlu0 %v611, 96
        %v617 = vpop.permute.xlu0 %616
        %618 = vrot.lane.b32.xlu0 %v613, 96
        %v619 = vpop.permute.xlu0 %618
        %620 = vrot.lane.b32.xlu0 %v615, 96
        %v621 = vpop.permute.xlu0 %620
        %622 = vrot.lane.b32.xlu0 %v614, 96
        %v623 = vpop.permute.xlu0 %622
        %vm628 = vcmask 1045504
        %v629 = vrot.slane %v600, 2
        %v630 = vrot.slane %v601, 2
        %v631 = vsel %vm628, %v629, %v630
        %v632 = vrot.slane %v602, 2
        %v633 = vsel %vm628, %v630, %v632
        %v634 = vrot.slane %v603, 2
        %v635 = vsel %vm628, %v632, %v634
        %636 = vrot.lane.b32.xlu0 %v631, 64
        %v637 = vpop.permute.xlu0 %636
        %638 = vrot.lane.b32.xlu0 %v633, 64
        %v639 = vpop.permute.xlu0 %638
        %640 = vrot.lane.b32.xlu0 %v635, 64
        %v641 = vpop.permute.xlu0 %640
        %642 = vrot.lane.b32.xlu0 %v634, 64
        %v643 = vpop.permute.xlu0 %642
        %vm648 = vcmask 1044480
        %v649 = vrot.slane %v600, 3
        %v650 = vrot.slane %v601, 3
        %v651 = vsel %vm648, %v649, %v650
        %v652 = vrot.slane %v602, 3
        %v653 = vsel %vm648, %v650, %v652
        %v654 = vrot.slane %v603, 3
        %v655 = vsel %vm648, %v652, %v654
        %656 = vrot.lane.b32.xlu0 %v651, 32
        %v657 = vpop.permute.xlu0 %656
        %658 = vrot.lane.b32.xlu0 %v653, 32
        %v659 = vpop.permute.xlu0 %658
        %660 = vrot.lane.b32.xlu0 %v655, 32
        %v661 = vpop.permute.xlu0 %660
        %662 = vrot.lane.b32.xlu0 %v654, 32
        %v663 = vpop.permute.xlu0 %662
        %vm668 = vcmask 1043456
        %v669 = vrot.slane %v600, 4
        %v670 = vrot.slane %v601, 4
        %v671 = vsel %vm668, %v669, %v670
        %v672 = vrot.slane %v602, 4
        %v673 = vsel %vm668, %v670, %v672
        %v674 = vrot.slane %v603, 4
        %v675 = vsel %vm668, %v672, %v674
        %vm676 = vcmask 785408
        %v677 = vsel %vm676, %v600, %v617
        %v678 = vsel %vm676, %v601, %v619
        %v679 = vsel %vm676, %v602, %v621
        %v680 = vsel %vm676, %v603, %v623
        %vm681 = vcmask 523264
        %v682 = vsel %vm681, %v617, %v637
        %v683 = vsel %vm681, %v619, %v639
        %v684 = vsel %vm681, %v621, %v641
        %v685 = vsel %vm681, %v623, %v643
        %vm686 = vcmask 261120
        %v687 = vsel %vm686, %v637, %v657
        %v688 = vsel %vm686, %v639, %v659
        %v689 = vsel %vm686, %v641, %v661
        %v690 = vsel %vm686, %v643, %v663
        %v691 = vld [vmem:[%s1] sm:$0xff]
        %v692 = vld [vmem:[%s1 + $0x8] sm:$0xff]
        %v693 = vld [vmem:[%s1 + $0x10] sm:$0xff]
        %v694 = vld [vmem:[%s1 + $0x18] sm:$0xff]
        %v695 = vld [vmem:[%s1 + $0x20] sm:$0xff]
        %v696 = vld [vmem:[%s1 + $0x28] sm:$0xff]
        %v697 = vld [vmem:[%s1 + $0x30] sm:$0xff]
        %v698 = vld [vmem:[%s1 + $0x38] sm:$0xff]
        %v699 = vld [vmem:[%s1 + $0x40] sm:$0xff]
        %v700 = vld [vmem:[%s1 + $0x48] sm:$0xff]
        %v701 = vld [vmem:[%s1 + $0x50] sm:$0xff]
        %v702 = vld [vmem:[%s1 + $0x58] sm:$0xff]
        %v703 = vld [vmem:[%s1 + $0x60] sm:$0xff]
        %v704 = vld [vmem:[%s1 + $0x68] sm:$0xff]
        %v705 = vld [vmem:[%s1 + $0x70] sm:$0xff]
        %v706 = vld [vmem:[%s1 + $0x78] sm:$0xff]
        %v707 = vld [vmem:[%s1 + $0x80] sm:$0xff]
        %v708 = vld [vmem:[%s1 + $0x88] sm:$0xff]
        %v709 = vld [vmem:[%s1 + $0x90] sm:$0xff]
        %v710 = vld [vmem:[%s1 + $0x98] sm:$0xff]
        %v711 = vld [vmem:[%s1 + $0xa0] sm:$0xff]
        %v712 = vld [vmem:[%s1 + $0xa8] sm:$0xff]
        %v713 = vld [vmem:[%s1 + $0xb0] sm:$0xff]
        %v714 = vld [vmem:[%s1 + $0xb8] sm:$0xff]
        %v715 = vld [vmem:[%s1 + $0xc0] sm:$0xff]
        %v716 = vld [vmem:[%s1 + $0xc8] sm:$0xff]
        %v717 = vld [vmem:[%s1 + $0xd0] sm:$0xff]
        %v718 = vld [vmem:[%s1 + $0xd8] sm:$0xff]
        %v719 = vld [vmem:[%s1 + $0xe0] sm:$0xff]
        %v720 = vld [vmem:[%s1 + $0xe8] sm:$0xff]
        %v721 = vld [vmem:[%s1 + $0xf0] sm:$0xff]
        %v722 = vld [vmem:[%s1 + $0xf8] sm:$0xff]
        %v723 = vld [vmem:[%s1 + $0x100] sm:$0xff]
        %v724 = vld [vmem:[%s1 + $0x108] sm:$0xff]
        %v725 = vld [vmem:[%s1 + $0x110] sm:$0xff]
        %v726 = vld [vmem:[%s1 + $0x118] sm:$0xff]
        %v727 = vld [vmem:[%s1 + $0x120] sm:$0xff]
        %v728 = vld [vmem:[%s1 + $0x128] sm:$0xff]
        %v729 = vld [vmem:[%s1 + $0x130] sm:$0xff]
        %v730 = vld [vmem:[%s1 + $0x138] sm:$0xff]
        %v731 = vld [vmem:[%s1 + $0x140] sm:$0xff]
        %v732 = vld [vmem:[%s1 + $0x148] sm:$0xff]
        %v733 = vld [vmem:[%s1 + $0x150] sm:$0xff]
        %v734 = vld [vmem:[%s1 + $0x158] sm:$0xff]
        %v735 = vld [vmem:[%s1 + $0x160] sm:$0xff]
        %v736 = vld [vmem:[%s1 + $0x168] sm:$0xff]
        %v737 = vld [vmem:[%s1 + $0x170] sm:$0xff]
        %v738 = vld [vmem:[%s1 + $0x178] sm:$0xff]
        %v739 = vld [vmem:[%s1 + $0x180] sm:$0xff]
        %v740 = vld [vmem:[%s1 + $0x188] sm:$0xff]
        %v741 = vld [vmem:[%s1 + $0x190] sm:$0xff]
        %v742 = vld [vmem:[%s1 + $0x198] sm:$0xff]
        %v743 = vld [vmem:[%s1 + $0x1a0] sm:$0xff]
        %v744 = vld [vmem:[%s1 + $0x1a8] sm:$0xff]
        %v745 = vld [vmem:[%s1 + $0x1b0] sm:$0xff]
        %v746 = vld [vmem:[%s1 + $0x1b8] sm:$0xff]
        %v747 = vld [vmem:[%s1 + $0x1c0] sm:$0xff]
        %v748 = vld [vmem:[%s1 + $0x1c8] sm:$0xff]
        %v749 = vld [vmem:[%s1 + $0x1d0] sm:$0xff]
        %v750 = vld [vmem:[%s1 + $0x1d8] sm:$0xff]
        %v751 = vld [vmem:[%s1 + $0x1e0] sm:$0xff]
        %v752 = vld [vmem:[%s1 + $0x1e8] sm:$0xff]
        %v753 = vld [vmem:[%s1 + $0x1f0] sm:$0xff]
        %v754 = vld [vmem:[%s1 + $0x1f8] sm:$0xff]
        %v755 = vld [vmem:[%s1 + $0x200] sm:$0xff]
        %v756 = vld [vmem:[%s1 + $0x208] sm:$0xff]
        %v757 = vld [vmem:[%s1 + $0x210] sm:$0xff]
        %v758 = vld [vmem:[%s1 + $0x218] sm:$0xff]
        %v759 = vld [vmem:[%s1 + $0x220] sm:$0xff]
        %v760 = vld [vmem:[%s1 + $0x228] sm:$0xff]
        %v761 = vld [vmem:[%s1 + $0x230] sm:$0xff]
        %v762 = vld [vmem:[%s1 + $0x238] sm:$0xff]
        %v763 = vld [vmem:[%s1 + $0x240] sm:$0xff]
        %v764 = vld [vmem:[%s1 + $0x248] sm:$0xff]
        %v765 = vld [vmem:[%s1 + $0x250] sm:$0xff]
        %v766 = vld [vmem:[%s1 + $0x258] sm:$0xff]
        %v767 = vld [vmem:[%s1 + $0x260] sm:$0xff]
        %v768 = vld [vmem:[%s1 + $0x268] sm:$0xff]
        %v769 = vld [vmem:[%s1 + $0x270] sm:$0xff]
        %v770 = vld [vmem:[%s1 + $0x278] sm:$0xff]
        %v771 = vld [vmem:[%s1 + $0x280] sm:$0xff]
        %v772 = vld [vmem:[%s1 + $0x288] sm:$0xff]
        %v773 = vld [vmem:[%s1 + $0x290] sm:$0xff]
        %v774 = vld [vmem:[%s1 + $0x298] sm:$0xff]
        %v775 = vld [vmem:[%s1 + $0x2a0] sm:$0xff]
        %v776 = vld [vmem:[%s1 + $0x2a8] sm:$0xff]
        %v777 = vld [vmem:[%s1 + $0x2b0] sm:$0xff]
        %v778 = vld [vmem:[%s1 + $0x2b8] sm:$0xff]
        %v779 = vld [vmem:[%s1 + $0x2c0] sm:$0xff]
        %v780 = vld [vmem:[%s1 + $0x2c8] sm:$0xff]
        %v781 = vld [vmem:[%s1 + $0x2d0] sm:$0xff]
        %v782 = vld [vmem:[%s1 + $0x2d8] sm:$0xff]
        %v783 = vld [vmem:[%s1 + $0x2e0] sm:$0xff]
        %v784 = vld [vmem:[%s1 + $0x2e8] sm:$0xff]
        %v785 = vld [vmem:[%s1 + $0x2f0] sm:$0xff]
        %v786 = vld [vmem:[%s1 + $0x2f8] sm:$0xff]
        %v787 = vld [vmem:[%s1 + $0x300] sm:$0xff]
        %v788 = vld [vmem:[%s1 + $0x308] sm:$0xff]
        %v789 = vld [vmem:[%s1 + $0x310] sm:$0xff]
        %v790 = vld [vmem:[%s1 + $0x318] sm:$0xff]
        %v791 = vld [vmem:[%s1 + $0x320] sm:$0xff]
        %v792 = vld [vmem:[%s1 + $0x328] sm:$0xff]
        %v793 = vld [vmem:[%s1 + $0x330] sm:$0xff]
        %v794 = vld [vmem:[%s1 + $0x338] sm:$0xff]
        %v795 = vld [vmem:[%s1 + $0x340] sm:$0xff]
        %v796 = vld [vmem:[%s1 + $0x348] sm:$0xff]
        %v797 = vld [vmem:[%s1 + $0x350] sm:$0xff]
        %v798 = vld [vmem:[%s1 + $0x358] sm:$0xff]
        %v799 = vld [vmem:[%s1 + $0x360] sm:$0xff]
        %v800 = vld [vmem:[%s1 + $0x368] sm:$0xff]
        %v801 = vld [vmem:[%s1 + $0x370] sm:$0xff]
        %v802 = vld [vmem:[%s1 + $0x378] sm:$0xff]
        %v803 = vld [vmem:[%s1 + $0x380] sm:$0xff]
        %v804 = vld [vmem:[%s1 + $0x388] sm:$0xff]
        %v805 = vld [vmem:[%s1 + $0x390] sm:$0xff]
        %v806 = vld [vmem:[%s1 + $0x398] sm:$0xff]
        %v807 = vld [vmem:[%s1 + $0x3a0] sm:$0xff]
        %v808 = vld [vmem:[%s1 + $0x3a8] sm:$0xff]
        %v809 = vld [vmem:[%s1 + $0x3b0] sm:$0xff]
        %v810 = vld [vmem:[%s1 + $0x3b8] sm:$0xff]
        %v811 = vld [vmem:[%s2] sm:$0x3]
        %v813 = vperm.slane %v811, 0
        %v814 = vperm.slane %v811, 1
        %v817 = vsel %vm676, %v671, 0
        %v819 = vsel %vm676, %v673, 0
        %v821 = vsel %vm676, %v675, 0
        %v823 = vsel %vm676, %v674, 0
        %825 = vmatpush.msra.mxu0 %v721
        %826 = vmatpush.msra.mxu0 %v719
        %827 = vmatpush.msra.mxu0 %v717
        %828 = vmatpush.msra.mxu0 %v715
        %829 = vmatpush.msra.mxu0 %v713
        %830 = vmatpush.msra.mxu0 %v711
        %831 = vmatpush.msra.mxu0 %v709
        %832 = vmatpush.msra.mxu0 %v707
        %833 = vmatpush.msra.mxu0 %v705
        %834 = vmatpush.msra.mxu0 %v703
        %835 = vmatpush.msra.mxu0 %v701
        %836 = vmatpush.msra.mxu0 %v699
        %837 = vmatpush.msra.mxu0 %v697
        %838 = vmatpush.msra.mxu0 %v695
        %839 = vmatpush.msra.mxu0 %v693
        %840 = vmatpush.msra.mxu0 %v691
        %841 = vmatmul.f32.gmra.mxu0 %v677
        %v842 = vpop.f32.mrf.mxu0
        %v843 = vadd.f32 %v813, %v842
        %844 = vmatmul.f32.gmra.mxu0 %v678
        %v845 = vpop.f32.mrf.mxu0
        %v846 = vadd.f32 %v813, %v845
        %847 = vmatmul.f32.gmra.mxu0 %v679
        %v848 = vpop.f32.mrf.mxu0
        %v849 = vadd.f32 %v813, %v848
        %850 = vmatmul.f32.gmra.mxu0 %v680
        %v851 = vpop.f32.mrf.mxu0
        %v852 = vadd.f32 %v813, %v851
        %853 = vdwg.mxu0
        %854 = vmatpush.msra.mxu0 %v753
        %855 = vmatpush.msra.mxu0 %v751
        %856 = vmatpush.msra.mxu0 %v749
        %857 = vmatpush.msra.mxu0 %v747
        %858 = vmatpush.msra.mxu0 %v745
        %859 = vmatpush.msra.mxu0 %v743
        %860 = vmatpush.msra.mxu0 %v741
        %861 = vmatpush.msra.mxu0 %v739
        %862 = vmatpush.msra.mxu0 %v737
        %863 = vmatpush.msra.mxu0 %v735
        %864 = vmatpush.msra.mxu0 %v733
        %865 = vmatpush.msra.mxu0 %v731
        %866 = vmatpush.msra.mxu0 %v729
        %867 = vmatpush.msra.mxu0 %v727
        %868 = vmatpush.msra.mxu0 %v725
        %869 = vmatpush.msra.mxu0 %v723
        %870 = vmatmul.f32.gmra.mxu0 %v682
        %v871 = vpop.f32.mrf.mxu0
        %v872 = vadd.f32 %v843, %v871
        %873 = vmatmul.f32.gmra.mxu0 %v683
        %v874 = vpop.f32.mrf.mxu0
        %v875 = vadd.f32 %v846, %v874
        %876 = vmatmul.f32.gmra.mxu0 %v684
        %v877 = vpop.f32.mrf.mxu0
        %v878 = vadd.f32 %v849, %v877
        %879 = vmatmul.f32.gmra.mxu0 %v685
        %v880 = vpop.f32.mrf.mxu0
        %v881 = vadd.f32 %v852, %v880
        %882 = vdwg.mxu0
        %883 = vmatpush.msra.mxu0 %v785
        %884 = vmatpush.msra.mxu0 %v783
        %885 = vmatpush.msra.mxu0 %v781
        %886 = vmatpush.msra.mxu0 %v779
        %887 = vmatpush.msra.mxu0 %v777
        %888 = vmatpush.msra.mxu0 %v775
        %889 = vmatpush.msra.mxu0 %v773
        %890 = vmatpush.msra.mxu0 %v771
        %891 = vmatpush.msra.mxu0 %v769
        %892 = vmatpush.msra.mxu0 %v767
        %893 = vmatpush.msra.mxu0 %v765
        %894 = vmatpush.msra.mxu0 %v763
        %895 = vmatpush.msra.mxu0 %v761
        %896 = vmatpush.msra.mxu0 %v759
        %897 = vmatpush.msra.mxu0 %v757
        %898 = vmatpush.msra.mxu0 %v755
        %899 = vmatmul.f32.gmra.mxu0 %v687
        %v900 = vpop.f32.mrf.mxu0
        %v901 = vadd.f32 %v872, %v900
        %902 = vmatmul.f32.gmra.mxu0 %v688
        %v903 = vpop.f32.mrf.mxu0
        %v904 = vadd.f32 %v875, %v903
        %905 = vmatmul.f32.gmra.mxu0 %v689
        %v906 = vpop.f32.mrf.mxu0
        %v907 = vadd.f32 %v878, %v906
        %908 = vmatmul.f32.gmra.mxu0 %v690
        %v909 = vpop.f32.mrf.mxu0
        %v910 = vadd.f32 %v881, %v909
        %911 = vdwg.mxu0
        %912 = vmatpush.msra.mxu0 0.0
        %913 = vmatpush.msra.mxu0 0.0
        %914 = vmatpush.msra.mxu0 0.0
        %915 = vmatpush.msra.mxu0 0.0
        %916 = vmatpush.msra.mxu0 %v809
        %917 = vmatpush.msra.mxu0 %v807
        %918 = vmatpush.msra.mxu0 %v805
        %919 = vmatpush.msra.mxu0 %v803
        %920 = vmatpush.msra.mxu0 %v801
        %921 = vmatpush.msra.mxu0 %v799
        %922 = vmatpush.msra.mxu0 %v797
        %923 = vmatpush.msra.mxu0 %v795
        %924 = vmatpush.msra.mxu0 %v793
        %925 = vmatpush.msra.mxu0 %v791
        %926 = vmatpush.msra.mxu0 %v789
        %927 = vmatpush.msra.mxu0 %v787
        %928 = vmatmul.f32.gmra.mxu0 %v817
        %v929 = vpop.f32.mrf.mxu0
        %v930 = vadd.f32 %v901, %v929
        %931 = vmatmul.f32.gmra.mxu0 %v819
        %v932 = vpop.f32.mrf.mxu0
        %v933 = vadd.f32 %v904, %v932
        %934 = vmatmul.f32.gmra.mxu0 %v821
        %v935 = vpop.f32.mrf.mxu0
        %v936 = vadd.f32 %v907, %v935
        %937 = vmatmul.f32.gmra.mxu0 %v823
        %v938 = vpop.f32.mrf.mxu0
        %v939 = vadd.f32 %v910, %v938
        %940 = vdwg.mxu0
        %941 = vmatpush.msra.mxu0 %v722
        %942 = vmatpush.msra.mxu0 %v720
        %943 = vmatpush.msra.mxu0 %v718
        %944 = vmatpush.msra.mxu0 %v716
        %945 = vmatpush.msra.mxu0 %v714
        %946 = vmatpush.msra.mxu0 %v712
        %947 = vmatpush.msra.mxu0 %v710
        %948 = vmatpush.msra.mxu0 %v708
        %949 = vmatpush.msra.mxu0 %v706
        %950 = vmatpush.msra.mxu0 %v704
        %951 = vmatpush.msra.mxu0 %v702
        %952 = vmatpush.msra.mxu0 %v700
        %953 = vmatpush.msra.mxu0 %v698
        %954 = vmatpush.msra.mxu0 %v696
        %955 = vmatpush.msra.mxu0 %v694
        %956 = vmatpush.msra.mxu0 %v692
        %957 = vmatmul.f32.gmra.mxu0 %v677
        %v958 = vpop.f32.mrf.mxu0
        %v959 = vadd.f32 %v814, %v958
        %960 = vmatmul.f32.gmra.mxu0 %v678
        %v961 = vpop.f32.mrf.mxu0
        %v962 = vadd.f32 %v814, %v961
        %963 = vmatmul.f32.gmra.mxu0 %v679
        %v964 = vpop.f32.mrf.mxu0
        %v965 = vadd.f32 %v814, %v964
        %966 = vmatmul.f32.gmra.mxu0 %v680
        %v967 = vpop.f32.mrf.mxu0
        %v968 = vadd.f32 %v814, %v967
        %969 = vdwg.mxu0
        %970 = vmatpush.msra.mxu0 %v754
        %971 = vmatpush.msra.mxu0 %v752
        %972 = vmatpush.msra.mxu0 %v750
        %973 = vmatpush.msra.mxu0 %v748
        %974 = vmatpush.msra.mxu0 %v746
        %975 = vmatpush.msra.mxu0 %v744
        %976 = vmatpush.msra.mxu0 %v742
        %977 = vmatpush.msra.mxu0 %v740
        %978 = vmatpush.msra.mxu0 %v738
        %979 = vmatpush.msra.mxu0 %v736
        %980 = vmatpush.msra.mxu0 %v734
        %981 = vmatpush.msra.mxu0 %v732
        %982 = vmatpush.msra.mxu0 %v730
        %983 = vmatpush.msra.mxu0 %v728
        %984 = vmatpush.msra.mxu0 %v726
        %985 = vmatpush.msra.mxu0 %v724
        %986 = vmatmul.f32.gmra.mxu0 %v682
        %v987 = vpop.f32.mrf.mxu0
        %v988 = vadd.f32 %v959, %v987
        %989 = vmatmul.f32.gmra.mxu0 %v683
        %v990 = vpop.f32.mrf.mxu0
        %v991 = vadd.f32 %v962, %v990
        %992 = vmatmul.f32.gmra.mxu0 %v684
        %v993 = vpop.f32.mrf.mxu0
        %v994 = vadd.f32 %v965, %v993
        %995 = vmatmul.f32.gmra.mxu0 %v685
        %v996 = vpop.f32.mrf.mxu0
        %v997 = vadd.f32 %v968, %v996
        %998 = vdwg.mxu0
        %999 = vmatpush.msra.mxu0 %v786
        %1000 = vmatpush.msra.mxu0 %v784
        %1001 = vmatpush.msra.mxu0 %v782
        %1002 = vmatpush.msra.mxu0 %v780
        %1003 = vmatpush.msra.mxu0 %v778
        %1004 = vmatpush.msra.mxu0 %v776
        %1005 = vmatpush.msra.mxu0 %v774
        %1006 = vmatpush.msra.mxu0 %v772
        %1007 = vmatpush.msra.mxu0 %v770
        %1008 = vmatpush.msra.mxu0 %v768
        %1009 = vmatpush.msra.mxu0 %v766
        %1010 = vmatpush.msra.mxu0 %v764
        %1011 = vmatpush.msra.mxu0 %v762
        %1012 = vmatpush.msra.mxu0 %v760
        %1013 = vmatpush.msra.mxu0 %v758
        %1014 = vmatpush.msra.mxu0 %v756
        %1015 = vmatmul.f32.gmra.mxu0 %v687
        %v1016 = vpop.f32.mrf.mxu0
        %v1017 = vadd.f32 %v988, %v1016
        %1018 = vmatmul.f32.gmra.mxu0 %v688
        %v1019 = vpop.f32.mrf.mxu0
        %v1020 = vadd.f32 %v991, %v1019
        %1021 = vmatmul.f32.gmra.mxu0 %v689
        %v1022 = vpop.f32.mrf.mxu0
        %v1023 = vadd.f32 %v994, %v1022
        %1024 = vmatmul.f32.gmra.mxu0 %v690
        %v1025 = vpop.f32.mrf.mxu0
        %v1026 = vadd.f32 %v997, %v1025
        %1027 = vdwg.mxu0
        %1028 = vmatpush.msra.mxu0 0.0
        %1029 = vmatpush.msra.mxu0 0.0
        %1030 = vmatpush.msra.mxu0 0.0
        %1031 = vmatpush.msra.mxu0 0.0
        %1032 = vmatpush.msra.mxu0 %v810
        %1033 = vmatpush.msra.mxu0 %v808
        %1034 = vmatpush.msra.mxu0 %v806
        %1035 = vmatpush.msra.mxu0 %v804
        %1036 = vmatpush.msra.mxu0 %v802
        %1037 = vmatpush.msra.mxu0 %v800
        %1038 = vmatpush.msra.mxu0 %v798
        %1039 = vmatpush.msra.mxu0 %v796
        %1040 = vmatpush.msra.mxu0 %v794
        %1041 = vmatpush.msra.mxu0 %v792
        %1042 = vmatpush.msra.mxu0 %v790
        %1043 = vmatpush.msra.mxu0 %v788
        %1044 = vmatmul.f32.gmra.mxu0 %v817
        %v1045 = vpop.f32.mrf.mxu0
        %v1046 = vadd.f32 %v1017, %v1045
        %1047 = vmatmul.f32.gmra.mxu0 %v819
        %v1048 = vpop.f32.mrf.mxu0
        %v1049 = vadd.f32 %v1020, %v1048
        %1050 = vmatmul.f32.gmra.mxu0 %v821
        %v1051 = vpop.f32.mrf.mxu0
        %v1052 = vadd.f32 %v1023, %v1051
        %1053 = vmatmul.f32.gmra.mxu0 %v823
        %v1054 = vpop.f32.mrf.mxu0
        %v1055 = vadd.f32 %v1026, %v1054
        %1056 = vdwg.mxu0
        %v1057 = vmax.f32 %v930, 0.0
        %v1058 = vmax.f32 %v1046, 0.0
        %v1059 = vmax.f32 %v933, 0.0
        %v1060 = vmax.f32 %v1049, 0.0
        %v1061 = vmax.f32 %v936, 0.0
        %v1062 = vmax.f32 %v1052, 0.0
        %v1063 = vmax.f32 %v939, 0.0
        %v1064 = vmax.f32 %v1055, 0.0
        %v1065 = vld [vmem:[%s3] sm:$0xff]
        %v1066 = vld [vmem:[%s3 + $0x8] sm:$0x3f]
        %vm1067 = vcmask 228352
        %v1069 = vsel %vm1067, %v1065, 0
        %v1072 = vsel %vm1067, %v1066, 0
        %v1075 = vsel %vm668, %v1063, 0
        %v1078 = vsel %vm668, %v1064, 0
        %1080 = vmatpush.msra.mxu0 0.0
        %1081 = vmatpush.msra.mxu0 0.0
        %1082 = vmatpush.msra.mxu0 0.0
        %1083 = vmatpush.msra.mxu0 0.0
        %1084 = vmatpush.msra.mxu0 0.0
        %1085 = vmatpush.msra.mxu0 0.0
        %1086 = vmatpush.msra.mxu0 0.0
        %1087 = vmatpush.msra.mxu0 0.0
        %1088 = vmatpush.msra.mxu0 0.0
        %1089 = vmatpush.msra.mxu0 0.0
        %1090 = vmatpush.msra.mxu0 0.0
        %1091 = vmatpush.msra.mxu0 0.0
        %1092 = vmatpush.msra.mxu0 %v1075
        %1093 = vmatpush.msra.mxu0 %v1061
        %1094 = vmatpush.msra.mxu0 %v1059
        %1095 = vmatpush.msra.mxu0 %v1057
        %1096 = vmatmul.f32.gmra.mxu0 %v1069
        %v1097 = vpop.f32.mrf.mxu0
        %v1098 = vadd.f32 0.0, %v1097
        %1099 = vmatmul.f32.gmra.mxu0 %v1072
        %v1100 = vpop.f32.mrf.mxu0
        %v1101 = vadd.f32 0.0, %v1100
        %1102 = vdwg.mxu0
        %1103 = vmatpush.msra.mxu0 0.0
        %1104 = vmatpush.msra.mxu0 0.0
        %1105 = vmatpush.msra.mxu0 0.0
        %1106 = vmatpush.msra.mxu0 0.0
        %1107 = vmatpush.msra.mxu0 0.0
        %1108 = vmatpush.msra.mxu0 0.0
        %1109 = vmatpush.msra.mxu0 0.0
        %1110 = vmatpush.msra.mxu0 0.0
        %1111 = vmatpush.msra.mxu0 0.0
        %1112 = vmatpush.msra.mxu0 0.0
        %1113 = vmatpush.msra.mxu0 0.0
        %1114 = vmatpush.msra.mxu0 0.0
        %1115 = vmatpush.msra.mxu0 %v1078
        %1116 = vmatpush.msra.mxu0 %v1062
        %1117 = vmatpush.msra.mxu0 %v1060
        %1118 = vmatpush.msra.mxu0 %v1058
        %1119 = vmatmul.f32.gmra.mxu0 %v1069
        %v1120 = vpop.f32.mrf.mxu0
        %v1121 = vadd.f32 0.0, %v1120
        %1122 = vmatmul.f32.gmra.mxu0 %v1072
        %v1123 = vpop.f32.mrf.mxu0
        %v1124 = vadd.f32 0.0, %v1123
        %1125 = vdwg.mxu0
        %v1126 = vld [vmem:[%s4] sm:$0xff]
        %v1127 = vld [vmem:[%s4 + $0x8] sm:$0x3f]
        %v1129 = vsel %vm1067, %v1126, 0
        %v1132 = vsel %vm1067, %v1127, 0
        %1134 = vmatpush.msra.mxu0 0.0
        %1135 = vmatpush.msra.mxu0 0.0
        %1136 = vmatpush.msra.mxu0 0.0
        %1137 = vmatpush.msra.mxu0 0.0
        %1138 = vmatpush.msra.mxu0 0.0
        %1139 = vmatpush.msra.mxu0 0.0
        %1140 = vmatpush.msra.mxu0 0.0
        %1141 = vmatpush.msra.mxu0 0.0
        %1142 = vmatpush.msra.mxu0 0.0
        %1143 = vmatpush.msra.mxu0 0.0
        %1144 = vmatpush.msra.mxu0 0.0
        %1145 = vmatpush.msra.mxu0 0.0
        %1146 = vmatpush.msra.mxu0 %v1075
        %1147 = vmatpush.msra.mxu0 %v1061
        %1148 = vmatpush.msra.mxu0 %v1059
        %1149 = vmatpush.msra.mxu0 %v1057
        %1150 = vmatmul.f32.gmra.mxu0 %v1129
        %v1151 = vpop.f32.mrf.mxu0
        %v1152 = vadd.f32 0.0, %v1151
        %1153 = vmatmul.f32.gmra.mxu0 %v1132
        %v1154 = vpop.f32.mrf.mxu0
        %v1155 = vadd.f32 0.0, %v1154
        %1156 = vdwg.mxu0
        %1157 = vmatpush.msra.mxu0 0.0
        %1158 = vmatpush.msra.mxu0 0.0
        %1159 = vmatpush.msra.mxu0 0.0
        %1160 = vmatpush.msra.mxu0 0.0
        %1161 = vmatpush.msra.mxu0 0.0
        %1162 = vmatpush.msra.mxu0 0.0
        %1163 = vmatpush.msra.mxu0 0.0
        %1164 = vmatpush.msra.mxu0 0.0
        %1165 = vmatpush.msra.mxu0 0.0
        %1166 = vmatpush.msra.mxu0 0.0
        %1167 = vmatpush.msra.mxu0 0.0
        %1168 = vmatpush.msra.mxu0 0.0
        %1169 = vmatpush.msra.mxu0 %v1078
        %1170 = vmatpush.msra.mxu0 %v1062
        %1171 = vmatpush.msra.mxu0 %v1060
        %1172 = vmatpush.msra.mxu0 %v1058
        %1173 = vmatmul.f32.gmra.mxu0 %v1129
        %v1174 = vpop.f32.mrf.mxu0
        %v1175 = vadd.f32 0.0, %v1174
        %1176 = vmatmul.f32.gmra.mxu0 %v1132
        %v1177 = vpop.f32.mrf.mxu0
        %v1178 = vadd.f32 0.0, %v1177
        %1179 = vdwg.mxu0
        %v1180 = vmax.f32 %v1098, %v1152
        %v1181 = vmax.f32 %v1121, %v1175
        %v1182 = vmax.f32 %v1101, %v1155
        %v1183 = vmax.f32 %v1124, %v1178
        %v1184 = vld [vmem:[%s5] sm:$0xff]
        %v1185 = vld [vmem:[%s5 + $0x8] sm:$0xff]
        %v1186 = vld [vmem:[%s5 + $0x10] sm:$0xff]
        %v1187 = vld [vmem:[%s5 + $0x18] sm:$0xff]
        %v1188 = vld [vmem:[%s5 + $0x20] sm:$0xff]
        %v1189 = vld [vmem:[%s5 + $0x28] sm:$0xff]
        %v1190 = vld [vmem:[%s5 + $0x30] sm:$0xff]
        %v1191 = vld [vmem:[%s5 + $0x38] sm:$0xff]
        %v1192 = vld [vmem:[%s5 + $0x40] sm:$0xff]
        %v1193 = vld [vmem:[%s5 + $0x48] sm:$0xff]
        %v1194 = vld [vmem:[%s5 + $0x50] sm:$0xff]
        %v1195 = vld [vmem:[%s5 + $0x58] sm:$0xff]
        %v1196 = vld [vmem:[%s5 + $0x60] sm:$0xff]
        %v1197 = vld [vmem:[%s5 + $0x68] sm:$0xff]
        %v1198 = vld [vmem:[%s5 + $0x70] sm:$0xff]
        %v1199 = vld [vmem:[%s5 + $0x78] sm:$0xff]
        %v1200 = vld [vmem:[%s5 + $0x80] sm:$0xff]
        %v1201 = vld [vmem:[%s5 + $0x88] sm:$0xff]
        %v1202 = vld [vmem:[%s5 + $0x90] sm:$0xff]
        %v1203 = vld [vmem:[%s5 + $0x98] sm:$0xff]
        %v1204 = vld [vmem:[%s5 + $0xa0] sm:$0xff]
        %vm1205 = vcmask 326656
        %v1207 = vsel %vm1205, %v1181, 0
        %v1210 = vsel %vm1205, %v1183, 0
        %1212 = vmatpush.msra.mxu0 %v1199
        %1213 = vmatpush.msra.mxu0 %v1198
        %1214 = vmatpush.msra.mxu0 %v1197
        %1215 = vmatpush.msra.mxu0 %v1196
        %1216 = vmatpush.msra.mxu0 %v1195
        %1217 = vmatpush.msra.mxu0 %v1194
        %1218 = vmatpush.msra.mxu0 %v1193
        %1219 = vmatpush.msra.mxu0 %v1192
        %1220 = vmatpush.msra.mxu0 %v1191
        %1221 = vmatpush.msra.mxu0 %v1190
        %1222 = vmatpush.msra.mxu0 %v1189
        %1223 = vmatpush.msra.mxu0 %v1188
        %1224 = vmatpush.msra.mxu0 %v1187
        %1225 = vmatpush.msra.mxu0 %v1186
        %1226 = vmatpush.msra.mxu0 %v1185
        %1227 = vmatpush.msra.mxu0 %v1184
        %1228 = vmatmul.f32.gmra.mxu0 %v1180
        %v1229 = vpop.f32.mrf.mxu0
        %v1230 = vadd.f32 0.0, %v1229
        %1231 = vmatmul.f32.gmra.mxu0 %v1182
        %v1232 = vpop.f32.mrf.mxu0
        %v1233 = vadd.f32 0.0, %v1232
        %1234 = vdwg.mxu0
        %1235 = vmatpush.msra.mxu0 0.0
        %1236 = vmatpush.msra.mxu0 0.0
        %1237 = vmatpush.msra.mxu0 0.0
        %1238 = vmatpush.msra.mxu0 0.0
        %1239 = vmatpush.msra.mxu0 0.0
        %1240 = vmatpush.msra.mxu0 0.0
        %1241 = vmatpush.msra.mxu0 0.0
        %1242 = vmatpush.msra.mxu0 0.0
        %1243 = vmatpush.msra.mxu0 0.0
        %1244 = vmatpush.msra.mxu0 0.0
        %1245 = vmatpush.msra.mxu0 0.0
        %1246 = vmatpush.msra.mxu0 %v1204
        %1247 = vmatpush.msra.mxu0 %v1203
        %1248 = vmatpush.msra.mxu0 %v1202
        %1249 = vmatpush.msra.mxu0 %v1201
        %1250 = vmatpush.msra.mxu0 %v1200
        %1251 = vmatmul.f32.gmra.mxu0 %v1207
        %v1252 = vpop.f32.mrf.mxu0
        %v1253 = vadd.f32 %v1230, %v1252
        %1254 = vmatmul.f32.gmra.mxu0 %v1210
        %v1255 = vpop.f32.mrf.mxu0
        %v1256 = vadd.f32 %v1233, %v1255
        %1257 = vdwg.mxu0
        %v1258 = vld [vmem:[%s6] sm:$0xff]
        %v1259 = vld [vmem:[%s6 + $0x8] sm:$0xff]
        %v1260 = vld [vmem:[%s6 + $0x10] sm:$0xff]
        %v1261 = vld [vmem:[%s6 + $0x18] sm:$0xff]
        %v1262 = vld [vmem:[%s6 + $0x20] sm:$0xff]
        %v1263 = vld [vmem:[%s6 + $0x28] sm:$0xff]
        %v1264 = vld [vmem:[%s6 + $0x30] sm:$0xff]
        %v1265 = vld [vmem:[%s6 + $0x38] sm:$0xff]
        %v1266 = vld [vmem:[%s6 + $0x40] sm:$0xff]
        %v1267 = vld [vmem:[%s6 + $0x48] sm:$0xff]
        %v1268 = vld [vmem:[%s6 + $0x50] sm:$0xff]
        %v1269 = vld [vmem:[%s6 + $0x58] sm:$0xff]
        %v1270 = vld [vmem:[%s6 + $0x60] sm:$0xff]
        %v1271 = vld [vmem:[%s6 + $0x68] sm:$0xff]
        %v1272 = vld [vmem:[%s6 + $0x70] sm:$0xff]
        %v1273 = vld [vmem:[%s6 + $0x78] sm:$0xff]
        %v1274 = vld [vmem:[%s6 + $0x80] sm:$0xff]
        %v1275 = vld [vmem:[%s6 + $0x88] sm:$0xff]
        %v1276 = vld [vmem:[%s6 + $0x90] sm:$0xff]
        %v1277 = vld [vmem:[%s6 + $0x98] sm:$0xff]
        %v1278 = vld [vmem:[%s6 + $0xa0] sm:$0xff]
        %1279 = vmatpush.msra.mxu0 %v1273
        %1280 = vmatpush.msra.mxu0 %v1272
        %1281 = vmatpush.msra.mxu0 %v1271
        %1282 = vmatpush.msra.mxu0 %v1270
        %1283 = vmatpush.msra.mxu0 %v1269
        %1284 = vmatpush.msra.mxu0 %v1268
        %1285 = vmatpush.msra.mxu0 %v1267
        %1286 = vmatpush.msra.mxu0 %v1266
        %1287 = vmatpush.msra.mxu0 %v1265
        %1288 = vmatpush.msra.mxu0 %v1264
        %1289 = vmatpush.msra.mxu0 %v1263
        %1290 = vmatpush.msra.mxu0 %v1262
        %1291 = vmatpush.msra.mxu0 %v1261
        %1292 = vmatpush.msra.mxu0 %v1260
        %1293 = vmatpush.msra.mxu0 %v1259
        %1294 = vmatpush.msra.mxu0 %v1258
        %1295 = vmatmul.f32.gmra.mxu0 %v1180
        %v1296 = vpop.f32.mrf.mxu0
        %v1297 = vadd.f32 0.0, %v1296
        %1298 = vmatmul.f32.gmra.mxu0 %v1182
        %v1299 = vpop.f32.mrf.mxu0
        %v1300 = vadd.f32 0.0, %v1299
        %1301 = vdwg.mxu0
        %1302 = vmatpush.msra.mxu0 0.0
        %1303 = vmatpush.msra.mxu0 0.0
        %1304 = vmatpush.msra.mxu0 0.0
        %1305 = vmatpush.msra.mxu0 0.0
        %1306 = vmatpush.msra.mxu0 0.0
        %1307 = vmatpush.msra.mxu0 0.0
        %1308 = vmatpush.msra.mxu0 0.0
        %1309 = vmatpush.msra.mxu0 0.0
        %1310 = vmatpush.msra.mxu0 0.0
        %1311 = vmatpush.msra.mxu0 0.0
        %1312 = vmatpush.msra.mxu0 0.0
        %1313 = vmatpush.msra.mxu0 %v1278
        %1314 = vmatpush.msra.mxu0 %v1277
        %1315 = vmatpush.msra.mxu0 %v1276
        %1316 = vmatpush.msra.mxu0 %v1275
        %1317 = vmatpush.msra.mxu0 %v1274
        %1318 = vmatmul.f32.gmra.mxu0 %v1207
        %v1319 = vpop.f32.mrf.mxu0
        %v1320 = vadd.f32 %v1297, %v1319
        %1321 = vmatmul.f32.gmra.mxu0 %v1210
        %v1322 = vpop.f32.mrf.mxu0
        %v1323 = vadd.f32 %v1300, %v1322
        %1324 = vdwg.mxu0
        %v1325 = vmax.f32 %v1253, %v1320
        %v1326 = vmax.f32 %v1256, %v1323
        %v1329 = vrot.slane %v1325, 1
        %v1330 = vrot.slane %v1326, 1
        %v1331 = vsel %vm608, %v1329, %v1330
        %1332 = vrot.lane.b32.xlu0 %v1331, 84
        %v1333 = vpop.permute.xlu0 %1332
        %1334 = vrot.lane.b32.xlu0 %v1330, 84
        %v1335 = vpop.permute.xlu0 %1334
        %v1338 = vrot.slane %v1325, 2
        %v1339 = vrot.slane %v1326, 2
        %v1340 = vsel %vm628, %v1338, %v1339
        %1341 = vrot.lane.b32.xlu0 %v1340, 40
        %v1342 = vpop.permute.xlu0 %1341
        %1343 = vrot.lane.b32.xlu0 %v1339, 40
        %v1344 = vpop.permute.xlu0 %1343
        %v1347 = vrot.slane %v1325, 3
        %v1348 = vrot.slane %v1326, 3
        %v1349 = vsel %vm648, %v1347, %v1348
        %1350 = vrot.lane.b32.xlu0 %v1349, 124
        %v1351 = vpop.permute.xlu0 %1350
        %1352 = vrot.lane.b32.xlu0 %v1348, 124
        %v1353 = vpop.permute.xlu0 %1352
        %v1356 = vrot.slane %v1325, 4
        %v1357 = vrot.slane %v1326, 4
        %v1358 = vsel %vm668, %v1356, %v1357
        %1359 = vrot.lane.b32.xlu0 %v1358, 80
        %v1360 = vpop.permute.xlu0 %1359
        %1361 = vrot.lane.b32.xlu0 %v1357, 80
        %v1362 = vpop.permute.xlu0 %1361
        %vm1365 = vcmask 687104
        %v1366 = vsel %vm1365, %v1325, %v1333
        %v1367 = vsel %vm1365, %v1326, %v1335
        %v1368 = vsel %vm1205, %v1333, %v1342
        %v1369 = vsel %vm1205, %v1335, %v1344
        %vm1370 = vcmask 1014784
        %v1371 = vsel %vm1370, %v1368, %v1351
        %v1372 = vsel %vm1370, %v1369, %v1353
        %vm1373 = vcmask 654336
        %v1374 = vsel %vm1373, %v1351, %v1360
        %v1375 = vsel %vm1373, %v1353, %v1362
        %v1376 = vld [vmem:[%s7] sm:$0xff]
        %v1377 = vld [vmem:[%s7 + $0x8] sm:$0xff]
        %v1378 = vld [vmem:[%s7 + $0x10] sm:$0xff]
        %v1379 = vld [vmem:[%s7 + $0x18] sm:$0xff]
        %v1380 = vld [vmem:[%s7 + $0x20] sm:$0xff]
        %v1381 = vld [vmem:[%s7 + $0x28] sm:$0xff]
        %v1382 = vld [vmem:[%s7 + $0x30] sm:$0xff]
        %v1383 = vld [vmem:[%s7 + $0x38] sm:$0xff]
        %v1384 = vld [vmem:[%s7 + $0x40] sm:$0xff]
        %v1385 = vld [vmem:[%s7 + $0x48] sm:$0xff]
        %v1386 = vld [vmem:[%s7 + $0x50] sm:$0xff]
        %v1387 = vld [vmem:[%s7 + $0x58] sm:$0xff]
        %v1388 = vld [vmem:[%s7 + $0x60] sm:$0xff]
        %v1389 = vld [vmem:[%s7 + $0x68] sm:$0xff]
        %v1390 = vld [vmem:[%s7 + $0x70] sm:$0xff]
        %v1391 = vld [vmem:[%s7 + $0x78] sm:$0xff]
        %v1392 = vld [vmem:[%s7 + $0x80] sm:$0xff]
        %v1393 = vld [vmem:[%s7 + $0x88] sm:$0xff]
        %v1394 = vld [vmem:[%s7 + $0x90] sm:$0xff]
        %v1395 = vld [vmem:[%s7 + $0x98] sm:$0xff]
        %v1396 = vld [vmem:[%s7 + $0xa0] sm:$0xff]
        %v1397 = vld [vmem:[%s7 + $0xa8] sm:$0xff]
        %v1398 = vld [vmem:[%s7 + $0xb0] sm:$0xff]
        %v1399 = vld [vmem:[%s7 + $0xb8] sm:$0xff]
        %v1400 = vld [vmem:[%s7 + $0xc0] sm:$0xff]
        %v1401 = vld [vmem:[%s7 + $0xc8] sm:$0xff]
        %v1402 = vld [vmem:[%s7 + $0xd0] sm:$0xff]
        %v1403 = vld [vmem:[%s7 + $0xd8] sm:$0xff]
        %v1404 = vld [vmem:[%s7 + $0xe0] sm:$0xff]
        %v1405 = vld [vmem:[%s7 + $0xe8] sm:$0xff]
        %v1406 = vld [vmem:[%s7 + $0xf0] sm:$0xff]
        %v1407 = vld [vmem:[%s7 + $0xf8] sm:$0xff]
        %v1408 = vld [vmem:[%s7 + $0x100] sm:$0xff]
        %v1409 = vld [vmem:[%s7 + $0x108] sm:$0xff]
        %v1410 = vld [vmem:[%s7 + $0x110] sm:$0xff]
        %v1411 = vld [vmem:[%s7 + $0x118] sm:$0xff]
        %v1412 = vld [vmem:[%s7 + $0x120] sm:$0xff]
        %v1413 = vld [vmem:[%s7 + $0x128] sm:$0xff]
        %v1414 = vld [vmem:[%s7 + $0x130] sm:$0xff]
        %v1415 = vld [vmem:[%s7 + $0x138] sm:$0xff]
        %v1416 = vld [vmem:[%s7 + $0x140] sm:$0xff]
        %v1417 = vld [vmem:[%s7 + $0x148] sm:$0xff]
        %v1418 = vld [vmem:[%s7 + $0x150] sm:$0xff]
        %v1419 = vld [vmem:[%s7 + $0x158] sm:$0xff]
        %v1420 = vld [vmem:[%s7 + $0x160] sm:$0xff]
        %v1421 = vld [vmem:[%s7 + $0x168] sm:$0xff]
        %v1422 = vld [vmem:[%s7 + $0x170] sm:$0xff]
        %v1423 = vld [vmem:[%s7 + $0x178] sm:$0xff]
        %v1424 = vld [vmem:[%s7 + $0x180] sm:$0xff]
        %v1425 = vld [vmem:[%s7 + $0x188] sm:$0xff]
        %v1426 = vld [vmem:[%s7 + $0x190] sm:$0xff]
        %v1427 = vld [vmem:[%s7 + $0x198] sm:$0xff]
        %v1428 = vld [vmem:[%s7 + $0x1a0] sm:$0xff]
        %v1429 = vld [vmem:[%s7 + $0x1a8] sm:$0xff]
        %v1430 = vld [vmem:[%s7 + $0x1b0] sm:$0xff]
        %v1431 = vld [vmem:[%s7 + $0x1b8] sm:$0xff]
        %v1432 = vld [vmem:[%s7 + $0x1c0] sm:$0xff]
        %v1433 = vld [vmem:[%s7 + $0x1c8] sm:$0xff]
        %v1434 = vld [vmem:[%s7 + $0x1d0] sm:$0xff]
        %v1435 = vld [vmem:[%s7 + $0x1d8] sm:$0xff]
        %v1436 = vld [vmem:[%s7 + $0x1e0] sm:$0xff]
        %v1437 = vld [vmem:[%s7 + $0x1e8] sm:$0xff]
        %v1438 = vld [vmem:[%s7 + $0x1f0] sm:$0xff]
        %v1439 = vld [vmem:[%s7 + $0x1f8] sm:$0xff]
        %v1440 = vld [vmem:[%s7 + $0x200] sm:$0xff]
        %v1441 = vld [vmem:[%s7 + $0x208] sm:$0xff]
        %v1442 = vld [vmem:[%s7 + $0x210] sm:$0xff]
        %v1443 = vld [vmem:[%s7 + $0x218] sm:$0xff]
        %v1444 = vld [vmem:[%s7 + $0x220] sm:$0xff]
        %v1445 = vld [vmem:[%s7 + $0x228] sm:$0xff]
        %v1446 = vld [vmem:[%s7 + $0x230] sm:$0xff]
        %v1447 = vld [vmem:[%s7 + $0x238] sm:$0xff]
        %v1448 = vld [vmem:[%s7 + $0x240] sm:$0xff]
        %v1449 = vld [vmem:[%s7 + $0x248] sm:$0xff]
        %v1450 = vld [vmem:[%s7 + $0x250] sm:$0xff]
        %v1451 = vld [vmem:[%s7 + $0x258] sm:$0xff]
        %v1452 = vld [vmem:[%s7 + $0x260] sm:$0xff]
        %v1453 = vld [vmem:[%s7 + $0x268] sm:$0xff]
        %v1454 = vld [vmem:[%s7 + $0x270] sm:$0xff]
        %v1455 = vld [vmem:[%s7 + $0x278] sm:$0xff]
        %v1456 = vld [vmem:[%s7 + $0x280] sm:$0xff]
        %v1457 = vld [vmem:[%s7 + $0x288] sm:$0xff]
        %v1458 = vld [vmem:[%s7 + $0x290] sm:$0xff]
        %v1459 = vld [vmem:[%s7 + $0x298] sm:$0xff]
        %v1460 = vld [vmem:[%s7 + $0x2a0] sm:$0xff]
        %v1461 = vld [vmem:[%s7 + $0x2a8] sm:$0xff]
        %v1462 = vld [vmem:[%s7 + $0x2b0] sm:$0xff]
        %v1463 = vld [vmem:[%s7 + $0x2b8] sm:$0xff]
        %v1464 = vld [vmem:[%s7 + $0x2c0] sm:$0xff]
        %v1465 = vld [vmem:[%s7 + $0x2c8] sm:$0xff]
        %v1466 = vld [vmem:[%s7 + $0x2d0] sm:$0xff]
        %v1467 = vld [vmem:[%s7 + $0x2d8] sm:$0xff]
        %v1468 = vld [vmem:[%s7 + $0x2e0] sm:$0xff]
        %v1469 = vld [vmem:[%s7 + $0x2e8] sm:$0xff]
        %v1470 = vld [vmem:[%s7 + $0x2f0] sm:$0xff]
        %v1471 = vld [vmem:[%s7 + $0x2f8] sm:$0xff]
        %v1472 = vld [vmem:[%s7 + $0x300] sm:$0xff]
        %v1473 = vld [vmem:[%s7 + $0x308] sm:$0xff]
        %v1474 = vld [vmem:[%s7 + $0x310] sm:$0xff]
        %v1475 = vld [vmem:[%s7 + $0x318] sm:$0xff]
        %v1476 = vld [vmem:[%s7 + $0x320] sm:$0xff]
        %v1477 = vld [vmem:[%s7 + $0x328] sm:$0xff]
        %v1478 = vld [vmem:[%s7 + $0x330] sm:$0xff]
        %v1479 = vld [vmem:[%s7 + $0x338] sm:$0xff]
        %v1480 = vld [vmem:[%s7 + $0x340] sm:$0xf]
        %v1481 = vld [vmem:[%s7 + $0x348] sm:$0xf]
        %v1482 = vld [vmem:[%s8] sm:$0x3]
        %v1484 = vperm.slane %v1482, 0
        %v1485 = vperm.slane %v1482, 1
        %vm1488 = vcmask 293888
        %v1489 = vsel %vm1488, %v1360, 0
        %v1491 = vsel %vm1488, %v1362, 0
        %v1494 = vsel %vm668, %v1480, 0
        %v1497 = vsel %vm668, %v1481, 0
        %1499 = vmatpush.msra.mxu0 %v1406
        %1500 = vmatpush.msra.mxu0 %v1404
        %1501 = vmatpush.msra.mxu0 %v1402
        %1502 = vmatpush.msra.mxu0 %v1400
        %1503 = vmatpush.msra.mxu0 %v1398
        %1504 = vmatpush.msra.mxu0 %v1396
        %1505 = vmatpush.msra.mxu0 %v1394
        %1506 = vmatpush.msra.mxu0 %v1392
        %1507 = vmatpush.msra.mxu0 %v1390
        %1508 = vmatpush.msra.mxu0 %v1388
        %1509 = vmatpush.msra.mxu0 %v1386
        %1510 = vmatpush.msra.mxu0 %v1384
        %1511 = vmatpush.msra.mxu0 %v1382
        %1512 = vmatpush.msra.mxu0 %v1380
        %1513 = vmatpush.msra.mxu0 %v1378
        %1514 = vmatpush.msra.mxu0 %v1376
        %1515 = vmatmul.f32.gmra.mxu0 %v1366
        %v1516 = vpop.f32.mrf.mxu0
        %v1517 = vadd.f32 %v1484, %v1516
        %1518 = vmatmul.f32.gmra.mxu0 %v1367
        %v1519 = vpop.f32.mrf.mxu0
        %v1520 = vadd.f32 %v1484, %v1519
        %1521 = vdwg.mxu0
        %1522 = vmatpush.msra.mxu0 %v1438
        %1523 = vmatpush.msra.mxu0 %v1436
        %1524 = vmatpush.msra.mxu0 %v1434
        %1525 = vmatpush.msra.mxu0 %v1432
        %1526 = vmatpush.msra.mxu0 %v1430
        %1527 = vmatpush.msra.mxu0 %v1428
        %1528 = vmatpush.msra.mxu0 %v1426
        %1529 = vmatpush.msra.mxu0 %v1424
        %1530 = vmatpush.msra.mxu0 %v1422
        %1531 = vmatpush.msra.mxu0 %v1420
        %1532 = vmatpush.msra.mxu0 %v1418
        %1533 = vmatpush.msra.mxu0 %v1416
        %1534 = vmatpush.msra.mxu0 %v1414
        %1535 = vmatpush.msra.mxu0 %v1412
        %1536 = vmatpush.msra.mxu0 %v1410
        %1537 = vmatpush.msra.mxu0 %v1408
        %1538 = vmatmul.f32.gmra.mxu0 %v1371
        %v1539 = vpop.f32.mrf.mxu0
        %v1540 = vadd.f32 %v1517, %v1539
        %1541 = vmatmul.f32.gmra.mxu0 %v1372
        %v1542 = vpop.f32.mrf.mxu0
        %v1543 = vadd.f32 %v1520, %v1542
        %1544 = vdwg.mxu0
        %1545 = vmatpush.msra.mxu0 %v1470
        %1546 = vmatpush.msra.mxu0 %v1468
        %1547 = vmatpush.msra.mxu0 %v1466
        %1548 = vmatpush.msra.mxu0 %v1464
        %1549 = vmatpush.msra.mxu0 %v1462
        %1550 = vmatpush.msra.mxu0 %v1460
        %1551 = vmatpush.msra.mxu0 %v1458
        %1552 = vmatpush.msra.mxu0 %v1456
        %1553 = vmatpush.msra.mxu0 %v1454
        %1554 = vmatpush.msra.mxu0 %v1452
        %1555 = vmatpush.msra.mxu0 %v1450
        %1556 = vmatpush.msra.mxu0 %v1448
        %1557 = vmatpush.msra.mxu0 %v1446
        %1558 = vmatpush.msra.mxu0 %v1444
        %1559 = vmatpush.msra.mxu0 %v1442
        %1560 = vmatpush.msra.mxu0 %v1440
        %1561 = vmatmul.f32.gmra.mxu0 %v1374
        %v1562 = vpop.f32.mrf.mxu0
        %v1563 = vadd.f32 %v1540, %v1562
        %1564 = vmatmul.f32.gmra.mxu0 %v1375
        %v1565 = vpop.f32.mrf.mxu0
        %v1566 = vadd.f32 %v1543, %v1565
        %1567 = vdwg.mxu0
        %1568 = vmatpush.msra.mxu0 0.0
        %1569 = vmatpush.msra.mxu0 0.0
        %1570 = vmatpush.msra.mxu0 0.0
        %1571 = vmatpush.msra.mxu0 0.0
        %1572 = vmatpush.msra.mxu0 0.0
        %1573 = vmatpush.msra.mxu0 0.0
        %1574 = vmatpush.msra.mxu0 0.0
        %1575 = vmatpush.msra.mxu0 0.0
        %1576 = vmatpush.msra.mxu0 0.0
        %1577 = vmatpush.msra.mxu0 0.0
        %1578 = vmatpush.msra.mxu0 0.0
        %1579 = vmatpush.msra.mxu0 %v1494
        %1580 = vmatpush.msra.mxu0 %v1478
        %1581 = vmatpush.msra.mxu0 %v1476
        %1582 = vmatpush.msra.mxu0 %v1474
        %1583 = vmatpush.msra.mxu0 %v1472
        %1584 = vmatmul.f32.gmra.mxu0 %v1489
        %v1585 = vpop.f32.mrf.mxu0
        %v1586 = vadd.f32 %v1563, %v1585
        %1587 = vmatmul.f32.gmra.mxu0 %v1491
        %v1588 = vpop.f32.mrf.mxu0
        %v1589 = vadd.f32 %v1566, %v1588
        %1590 = vdwg.mxu0
        %1591 = vmatpush.msra.mxu0 %v1407
        %1592 = vmatpush.msra.mxu0 %v1405
        %1593 = vmatpush.msra.mxu0 %v1403
        %1594 = vmatpush.msra.mxu0 %v1401
        %1595 = vmatpush.msra.mxu0 %v1399
        %1596 = vmatpush.msra.mxu0 %v1397
        %1597 = vmatpush.msra.mxu0 %v1395
        %1598 = vmatpush.msra.mxu0 %v1393
        %1599 = vmatpush.msra.mxu0 %v1391
        %1600 = vmatpush.msra.mxu0 %v1389
        %1601 = vmatpush.msra.mxu0 %v1387
        %1602 = vmatpush.msra.mxu0 %v1385
        %1603 = vmatpush.msra.mxu0 %v1383
        %1604 = vmatpush.msra.mxu0 %v1381
        %1605 = vmatpush.msra.mxu0 %v1379
        %1606 = vmatpush.msra.mxu0 %v1377
        %1607 = vmatmul.f32.gmra.mxu0 %v1366
        %v1608 = vpop.f32.mrf.mxu0
        %v1609 = vadd.f32 %v1485, %v1608
        %1610 = vmatmul.f32.gmra.mxu0 %v1367
        %v1611 = vpop.f32.mrf.mxu0
        %v1612 = vadd.f32 %v1485, %v1611
        %1613 = vdwg.mxu0
        %1614 = vmatpush.msra.mxu0 %v1439
        %1615 = vmatpush.msra.mxu0 %v1437
        %1616 = vmatpush.msra.mxu0 %v1435
        %1617 = vmatpush.msra.mxu0 %v1433
        %1618 = vmatpush.msra.mxu0 %v1431
        %1619 = vmatpush.msra.mxu0 %v1429
        %1620 = vmatpush.msra.mxu0 %v1427
        %1621 = vmatpush.msra.mxu0 %v1425
        %1622 = vmatpush.msra.mxu0 %v1423
        %1623 = vmatpush.msra.mxu0 %v1421
        %1624 = vmatpush.msra.mxu0 %v1419
        %1625 = vmatpush.msra.mxu0 %v1417
        %1626 = vmatpush.msra.mxu0 %v1415
        %1627 = vmatpush.msra.mxu0 %v1413
        %1628 = vmatpush.msra.mxu0 %v1411
        %1629 = vmatpush.msra.mxu0 %v1409
        %1630 = vmatmul.f32.gmra.mxu0 %v1371
        %v1631 = vpop.f32.mrf.mxu0
        %v1632 = vadd.f32 %v1609, %v1631
        %1633 = vmatmul.f32.gmra.mxu0 %v1372
        %v1634 = vpop.f32.mrf.mxu0
        %v1635 = vadd.f32 %v1612, %v1634
        %1636 = vdwg.mxu0
        %1637 = vmatpush.msra.mxu0 %v1471
        %1638 = vmatpush.msra.mxu0 %v1469
        %1639 = vmatpush.msra.mxu0 %v1467
        %1640 = vmatpush.msra.mxu0 %v1465
        %1641 = vmatpush.msra.mxu0 %v1463
        %1642 = vmatpush.msra.mxu0 %v1461
        %1643 = vmatpush.msra.mxu0 %v1459
        %1644 = vmatpush.msra.mxu0 %v1457
        %1645 = vmatpush.msra.mxu0 %v1455
        %1646 = vmatpush.msra.mxu0 %v1453
        %1647 = vmatpush.msra.mxu0 %v1451
        %1648 = vmatpush.msra.mxu0 %v1449
        %1649 = vmatpush.msra.mxu0 %v1447
        %1650 = vmatpush.msra.mxu0 %v1445
        %1651 = vmatpush.msra.mxu0 %v1443
        %1652 = vmatpush.msra.mxu0 %v1441
        %1653 = vmatmul.f32.gmra.mxu0 %v1374
        %v1654 = vpop.f32.mrf.mxu0
        %v1655 = vadd.f32 %v1632, %v1654
        %1656 = vmatmul.f32.gmra.mxu0 %v1375
        %v1657 = vpop.f32.mrf.mxu0
        %v1658 = vadd.f32 %v1635, %v1657
        %1659 = vdwg.mxu0
        %1660 = vmatpush.msra.mxu0 0.0
        %1661 = vmatpush.msra.mxu0 0.0
        %1662 = vmatpush.msra.mxu0 0.0
        %1663 = vmatpush.msra.mxu0 0.0
        %1664 = vmatpush.msra.mxu0 0.0
        %1665 = vmatpush.msra.mxu0 0.0
        %1666 = vmatpush.msra.mxu0 0.0
        %1667 = vmatpush.msra.mxu0 0.0
        %1668 = vmatpush.msra.mxu0 0.0
        %1669 = vmatpush.msra.mxu0 0.0
        %1670 = vmatpush.msra.mxu0 0.0
        %1671 = vmatpush.msra.mxu0 %v1497
        %1672 = vmatpush.msra.mxu0 %v1479
        %1673 = vmatpush.msra.mxu0 %v1477
        %1674 = vmatpush.msra.mxu0 %v1475
        %1675 = vmatpush.msra.mxu0 %v1473
        %1676 = vmatmul.f32.gmra.mxu0 %v1489
        %v1677 = vpop.f32.mrf.mxu0
        %v1678 = vadd.f32 %v1655, %v1677
        %1679 = vmatmul.f32.gmra.mxu0 %v1491
        %v1680 = vpop.f32.mrf.mxu0
        %v1681 = vadd.f32 %v1658, %v1680
        %1682 = vdwg.mxu0
        %v1683 = vmax.f32 %v1586, 0.0
        %v1684 = vmax.f32 %v1678, 0.0
        %v1685 = vmax.f32 %v1589, 0.0
        %v1686 = vmax.f32 %v1681, 0.0
        %v1687 = vld [vmem:[%s9] sm:$0x1f]
        %vm1688 = vcmask 80896
        %v1690 = vsel %vm1688, %v1687, 0
        %vm1692 = vcmask 1041408
        %v1694 = vsel %vm1692, %v1685, 0
        %v1697 = vsel %vm1692, %v1686, 0
        %1699 = vmatpush.msra.mxu0 0.0
        %1700 = vmatpush.msra.mxu0 0.0
        %1701 = vmatpush.msra.mxu0 0.0
        %1702 = vmatpush.msra.mxu0 0.0
        %1703 = vmatpush.msra.mxu0 0.0
        %1704 = vmatpush.msra.mxu0 0.0
        %1705 = vmatpush.msra.mxu0 0.0
        %1706 = vmatpush.msra.mxu0 0.0
        %1707 = vmatpush.msra.mxu0 0.0
        %1708 = vmatpush.msra.mxu0 0.0
        %1709 = vmatpush.msra.mxu0 0.0
        %1710 = vmatpush.msra.mxu0 0.0
        %1711 = vmatpush.msra.mxu0 0.0
        %1712 = vmatpush.msra.mxu0 0.0
        %1713 = vmatpush.msra.mxu0 %v1694
        %1714 = vmatpush.msra.mxu0 %v1683
        %1715 = vmatmul.f32.gmra.mxu0 %v1690
        %v1716 = vpop.f32.mrf.mxu0
        %v1717 = vadd.f32 0.0, %v1716
        %1718 = vdwg.mxu0
        %1719 = vmatpush.msra.mxu0 0.0
        %1720 = vmatpush.msra.mxu0 0.0
        %1721 = vmatpush.msra.mxu0 0.0
        %1722 = vmatpush.msra.mxu0 0.0
        %1723 = vmatpush.msra.mxu0 0.0
        %1724 = vmatpush.msra.mxu0 0.0
        %1725 = vmatpush.msra.mxu0 0.0
        %1726 = vmatpush.msra.mxu0 0.0
        %1727 = vmatpush.msra.mxu0 0.0
        %1728 = vmatpush.msra.mxu0 0.0
        %1729 = vmatpush.msra.mxu0 0.0
        %1730 = vmatpush.msra.mxu0 0.0
        %1731 = vmatpush.msra.mxu0 0.0
        %1732 = vmatpush.msra.mxu0 0.0
        %1733 = vmatpush.msra.mxu0 %v1697
        %1734 = vmatpush.msra.mxu0 %v1684
        %1735 = vmatmul.f32.gmra.mxu0 %v1690
        %v1736 = vpop.f32.mrf.mxu0
        %v1737 = vadd.f32 0.0, %v1736
        %1738 = vdwg.mxu0
        %v1739 = vld [vmem:[%s10] sm:$0x1f]
        %v1741 = vsel %vm1688, %v1739, 0
        %1743 = vmatpush.msra.mxu0 0.0
        %1744 = vmatpush.msra.mxu0 0.0
        %1745 = vmatpush.msra.mxu0 0.0
        %1746 = vmatpush.msra.mxu0 0.0
        %1747 = vmatpush.msra.mxu0 0.0
        %1748 = vmatpush.msra.mxu0 0.0
        %1749 = vmatpush.msra.mxu0 0.0
        %1750 = vmatpush.msra.mxu0 0.0
        %1751 = vmatpush.msra.mxu0 0.0
        %1752 = vmatpush.msra.mxu0 0.0
        %1753 = vmatpush.msra.mxu0 0.0
        %1754 = vmatpush.msra.mxu0 0.0
        %1755 = vmatpush.msra.mxu0 0.0
        %1756 = vmatpush.msra.mxu0 0.0
        %1757 = vmatpush.msra.mxu0 %v1694
        %1758 = vmatpush.msra.mxu0 %v1683
        %1759 = vmatmul.f32.gmra.mxu0 %v1741
        %v1760 = vpop.f32.mrf.mxu0
        %v1761 = vadd.f32 0.0, %v1760
        %1762 = vdwg.mxu0
        %1763 = vmatpush.msra.mxu0 0.0
        %1764 = vmatpush.msra.mxu0 0.0
        %1765 = vmatpush.msra.mxu0 0.0
        %1766 = vmatpush.msra.mxu0 0.0
        %1767 = vmatpush.msra.mxu0 0.0
        %1768 = vmatpush.msra.mxu0 0.0
        %1769 = vmatpush.msra.mxu0 0.0
        %1770 = vmatpush.msra.mxu0 0.0
        %1771 = vmatpush.msra.mxu0 0.0
        %1772 = vmatpush.msra.mxu0 0.0
        %1773 = vmatpush.msra.mxu0 0.0
        %1774 = vmatpush.msra.mxu0 0.0
        %1775 = vmatpush.msra.mxu0 0.0
        %1776 = vmatpush.msra.mxu0 0.0
        %1777 = vmatpush.msra.mxu0 %v1697
        %1778 = vmatpush.msra.mxu0 %v1684
        %1779 = vmatmul.f32.gmra.mxu0 %v1741
        %v1780 = vpop.f32.mrf.mxu0
        %v1781 = vadd.f32 0.0, %v1780
        %1782 = vdwg.mxu0
        %v1783 = vmax.f32 %v1717, %v1761
        %v1784 = vmax.f32 %v1737, %v1781
        %v1785 = vld [vmem:[%s11] sm:$0xff]
        %v1786 = vld [vmem:[%s11 + $0x8] sm:$0xff]
        %v1787 = vld [vmem:[%s11 + $0x10] sm:$0xff]
        %v1788 = vld [vmem:[%s11 + $0x18] sm:$0xff]
        %v1789 = vld [vmem:[%s11 + $0x20] sm:$0xff]
        %v1790 = vld [vmem:[%s11 + $0x28] sm:$0xff]
        %v1791 = vld [vmem:[%s11 + $0x30] sm:$0xff]
        %v1792 = vld [vmem:[%s11 + $0x38] sm:$0xff]
        %v1793 = vld [vmem:[%s11 + $0x40] sm:$0xff]
        %v1794 = vld [vmem:[%s11 + $0x48] sm:$0xff]
        %v1795 = vld [vmem:[%s11 + $0x50] sm:$0xff]
        %v1796 = vld [vmem:[%s11 + $0x58] sm:$0xff]
        %v1797 = vld [vmem:[%s11 + $0x60] sm:$0xff]
        %v1798 = vld [vmem:[%s11 + $0x68] sm:$0xff]
        %v1799 = vld [vmem:[%s11 + $0x70] sm:$0xff]
        %v1800 = vld [vmem:[%s11 + $0x78] sm:$0xff]
        %v1801 = vld [vmem:[%s11 + $0x80] sm:$0xff]
        %v1802 = vld [vmem:[%s11 + $0x88] sm:$0xff]
        %v1803 = vld [vmem:[%s11 + $0x90] sm:$0xff]
        %v1804 = vld [vmem:[%s11 + $0x98] sm:$0xff]
        %v1806 = vsel %vm686, %v1784, 0
        %1808 = vmatpush.msra.mxu0 %v1800
        %1809 = vmatpush.msra.mxu0 %v1799
        %1810 = vmatpush.msra.mxu0 %v1798
        %1811 = vmatpush.msra.mxu0 %v1797
        %1812 = vmatpush.msra.mxu0 %v1796
        %1813 = vmatpush.msra.mxu0 %v1795
        %1814 = vmatpush.msra.mxu0 %v1794
        %1815 = vmatpush.msra.mxu0 %v1793
        %1816 = vmatpush.msra.mxu0 %v1792
        %1817 = vmatpush.msra.mxu0 %v1791
        %1818 = vmatpush.msra.mxu0 %v1790
        %1819 = vmatpush.msra.mxu0 %v1789
        %1820 = vmatpush.msra.mxu0 %v1788
        %1821 = vmatpush.msra.mxu0 %v1787
        %1822 = vmatpush.msra.mxu0 %v1786
        %1823 = vmatpush.msra.mxu0 %v1785
        %1824 = vmatmul.f32.gmra.mxu0 %v1783
        %v1825 = vpop.f32.mrf.mxu0
        %v1826 = vadd.f32 0.0, %v1825
        %1827 = vdwg.mxu0
        %1828 = vmatpush.msra.mxu0 0.0
        %1829 = vmatpush.msra.mxu0 0.0
        %1830 = vmatpush.msra.mxu0 0.0
        %1831 = vmatpush.msra.mxu0 0.0
        %1832 = vmatpush.msra.mxu0 0.0
        %1833 = vmatpush.msra.mxu0 0.0
        %1834 = vmatpush.msra.mxu0 0.0
        %1835 = vmatpush.msra.mxu0 0.0
        %1836 = vmatpush.msra.mxu0 0.0
        %1837 = vmatpush.msra.mxu0 0.0
        %1838 = vmatpush.msra.mxu0 0.0
        %1839 = vmatpush.msra.mxu0 0.0
        %1840 = vmatpush.msra.mxu0 %v1804
        %1841 = vmatpush.msra.mxu0 %v1803
        %1842 = vmatpush.msra.mxu0 %v1802
        %1843 = vmatpush.msra.mxu0 %v1801
        %1844 = vmatmul.f32.gmra.mxu0 %v1806
        %v1845 = vpop.f32.mrf.mxu0
        %v1846 = vadd.f32 %v1826, %v1845
        %1847 = vdwg.mxu0
        %v1848 = vld [vmem:[%s12] sm:$0xff]
        %v1849 = vld [vmem:[%s12 + $0x8] sm:$0xff]
        %v1850 = vld [vmem:[%s12 + $0x10] sm:$0xff]
        %v1851 = vld [vmem:[%s12 + $0x18] sm:$0xff]
        %v1852 = vld [vmem:[%s12 + $0x20] sm:$0xff]
        %v1853 = vld [vmem:[%s12 + $0x28] sm:$0xff]
        %v1854 = vld [vmem:[%s12 + $0x30] sm:$0xff]
        %v1855 = vld [vmem:[%s12 + $0x38] sm:$0xff]
        %v1856 = vld [vmem:[%s12 + $0x40] sm:$0xff]
        %v1857 = vld [vmem:[%s12 + $0x48] sm:$0xff]
        %v1858 = vld [vmem:[%s12 + $0x50] sm:$0xff]
        %v1859 = vld [vmem:[%s12 + $0x58] sm:$0xff]
        %v1860 = vld [vmem:[%s12 + $0x60] sm:$0xff]
        %v1861 = vld [vmem:[%s12 + $0x68] sm:$0xff]
        %v1862 = vld [vmem:[%s12 + $0x70] sm:$0xff]
        %v1863 = vld [vmem:[%s12 + $0x78] sm:$0xff]
        %v1864 = vld [vmem:[%s12 + $0x80] sm:$0xff]
        %v1865 = vld [vmem:[%s12 + $0x88] sm:$0xff]
        %v1866 = vld [vmem:[%s12 + $0x90] sm:$0xff]
        %v1867 = vld [vmem:[%s12 + $0x98] sm:$0xff]
        %1868 = vmatpush.msra.mxu0 %v1863
        %1869 = vmatpush.msra.mxu0 %v1862
        %1870 = vmatpush.msra.mxu0 %v1861
        %1871 = vmatpush.msra.mxu0 %v1860
        %1872 = vmatpush.msra.mxu0 %v1859
        %1873 = vmatpush.msra.mxu0 %v1858
        %1874 = vmatpush.msra.mxu0 %v1857
        %1875 = vmatpush.msra.mxu0 %v1856
        %1876 = vmatpush.msra.mxu0 %v1855
        %1877 = vmatpush.msra.mxu0 %v1854
        %1878 = vmatpush.msra.mxu0 %v1853
        %1879 = vmatpush.msra.mxu0 %v1852
        %1880 = vmatpush.msra.mxu0 %v1851
        %1881 = vmatpush.msra.mxu0 %v1850
        %1882 = vmatpush.msra.mxu0 %v1849
        %1883 = vmatpush.msra.mxu0 %v1848
        %1884 = vmatmul.f32.gmra.mxu0 %v1783
        %v1885 = vpop.f32.mrf.mxu0
        %v1886 = vadd.f32 0.0, %v1885
        %1887 = vdwg.mxu0
        %1888 = vmatpush.msra.mxu0 0.0
        %1889 = vmatpush.msra.mxu0 0.0
        %1890 = vmatpush.msra.mxu0 0.0
        %1891 = vmatpush.msra.mxu0 0.0
        %1892 = vmatpush.msra.mxu0 0.0
        %1893 = vmatpush.msra.mxu0 0.0
        %1894 = vmatpush.msra.mxu0 0.0
        %1895 = vmatpush.msra.mxu0 0.0
        %1896 = vmatpush.msra.mxu0 0.0
        %1897 = vmatpush.msra.mxu0 0.0
        %1898 = vmatpush.msra.mxu0 0.0
        %1899 = vmatpush.msra.mxu0 0.0
        %1900 = vmatpush.msra.mxu0 %v1867
        %1901 = vmatpush.msra.mxu0 %v1866
        %1902 = vmatpush.msra.mxu0 %v1865
        %1903 = vmatpush.msra.mxu0 %v1864
        %1904 = vmatmul.f32.gmra.mxu0 %v1806
        %v1905 = vpop.f32.mrf.mxu0
        %v1906 = vadd.f32 %v1886, %v1905
        %1907 = vdwg.mxu0
        %v1908 = vmax.f32 %v1846, %v1906
        %v1910 = vrot.slane %v1908, 1
        %1911 = vrot.lane.b32.xlu0 %v1910, 80
        %v1912 = vpop.permute.xlu0 %1911
        %v1914 = vrot.slane %v1908, 2
        %1915 = vrot.lane.b32.xlu0 %v1914, 32
        %v1916 = vpop.permute.xlu0 %1915
        %v1918 = vrot.slane %v1908, 3
        %1919 = vrot.lane.b32.xlu0 %v1918, 112
        %v1920 = vpop.permute.xlu0 %1919
        %v1922 = vrot.slane %v1908, 4
        %1923 = vrot.lane.b32.xlu0 %v1922, 64
        %v1924 = vpop.permute.xlu0 %1923
        %v1926 = vsel %vm1373, %v1908, %v1912
        %v1927 = vsel %vm686, %v1912, %v1916
        %vm1928 = vcmask 916480
        %v1929 = vsel %vm1928, %v1927, %v1920
        %v1930 = vsel %vm681, %v1920, %v1924
        %v1931 = vld [vmem:[%s13] sm:$0xff]
        %v1932 = vld [vmem:[%s13 + $0x8] sm:$0xff]
        %v1933 = vld [vmem:[%s13 + $0x10] sm:$0xff]
        %v1934 = vld [vmem:[%s13 + $0x18] sm:$0xff]
        %v1935 = vld [vmem:[%s13 + $0x20] sm:$0xff]
        %v1936 = vld [vmem:[%s13 + $0x28] sm:$0xff]
        %v1937 = vld [vmem:[%s13 + $0x30] sm:$0xff]
        %v1938 = vld [vmem:[%s13 + $0x38] sm:$0xff]
        %v1939 = vld [vmem:[%s13 + $0x40] sm:$0xff]
        %v1940 = vld [vmem:[%s13 + $0x48] sm:$0xff]
        %v1941 = vld [vmem:[%s13 + $0x50] sm:$0xff]
        %v1942 = vld [vmem:[%s13 + $0x58] sm:$0xff]
        %v1943 = vld [vmem:[%s13 + $0x60] sm:$0xff]
        %v1944 = vld [vmem:[%s13 + $0x68] sm:$0xff]
        %v1945 = vld [vmem:[%s13 + $0x70] sm:$0xff]
        %v1946 = vld [vmem:[%s13 + $0x78] sm:$0xff]
        %v1947 = vld [vmem:[%s13 + $0x80] sm:$0xff]
        %v1948 = vld [vmem:[%s13 + $0x88] sm:$0xff]
        %v1949 = vld [vmem:[%s13 + $0x90] sm:$0xff]
        %v1950 = vld [vmem:[%s13 + $0x98] sm:$0xff]
        %v1951 = vld [vmem:[%s13 + $0xa0] sm:$0xff]
        %v1952 = vld [vmem:[%s13 + $0xa8] sm:$0xff]
        %v1953 = vld [vmem:[%s13 + $0xb0] sm:$0xff]
        %v1954 = vld [vmem:[%s13 + $0xb8] sm:$0xff]
        %v1955 = vld [vmem:[%s13 + $0xc0] sm:$0xff]
        %v1956 = vld [vmem:[%s13 + $0xc8] sm:$0xff]
        %v1957 = vld [vmem:[%s13 + $0xd0] sm:$0xff]
        %v1958 = vld [vmem:[%s13 + $0xd8] sm:$0xff]
        %v1959 = vld [vmem:[%s13 + $0xe0] sm:$0xff]
        %v1960 = vld [vmem:[%s13 + $0xe8] sm:$0xff]
        %v1961 = vld [vmem:[%s13 + $0xf0] sm:$0xff]
        %v1962 = vld [vmem:[%s13 + $0xf8] sm:$0xff]
        %v1963 = vld [vmem:[%s13 + $0x100] sm:$0xff]
        %v1964 = vld [vmem:[%s13 + $0x108] sm:$0xff]
        %v1965 = vld [vmem:[%s13 + $0x110] sm:$0xff]
        %v1966 = vld [vmem:[%s13 + $0x118] sm:$0xff]
        %v1967 = vld [vmem:[%s13 + $0x120] sm:$0xff]
        %v1968 = vld [vmem:[%s13 + $0x128] sm:$0xff]
        %v1969 = vld [vmem:[%s13 + $0x130] sm:$0xff]
        %v1970 = vld [vmem:[%s13 + $0x138] sm:$0xff]
        %v1971 = vld [vmem:[%s13 + $0x140] sm:$0xff]
        %v1972 = vld [vmem:[%s13 + $0x148] sm:$0xff]
        %v1973 = vld [vmem:[%s13 + $0x150] sm:$0xff]
        %v1974 = vld [vmem:[%s13 + $0x158] sm:$0xff]
        %v1975 = vld [vmem:[%s13 + $0x160] sm:$0xff]
        %v1976 = vld [vmem:[%s13 + $0x168] sm:$0xff]
        %v1977 = vld [vmem:[%s13 + $0x170] sm:$0xff]
        %v1978 = vld [vmem:[%s13 + $0x178] sm:$0xff]
        %v1979 = vld [vmem:[%s13 + $0x180] sm:$0xff]
        %v1980 = vld [vmem:[%s13 + $0x188] sm:$0xff]
        %v1981 = vld [vmem:[%s14] sm:$0x1]
        %vm1982 = vcmask 130048
        %v1983 = vsel %vm1982, %v1924, 0
        %1985 = vmatpush.msra.mxu0 %v1946
        %1986 = vmatpush.msra.mxu0 %v1945
        %1987 = vmatpush.msra.mxu0 %v1944
        %1988 = vmatpush.msra.mxu0 %v1943
        %1989 = vmatpush.msra.mxu0 %v1942
        %1990 = vmatpush.msra.mxu0 %v1941
        %1991 = vmatpush.msra.mxu0 %v1940
        %1992 = vmatpush.msra.mxu0 %v1939
        %1993 = vmatpush.msra.mxu0 %v1938
        %1994 = vmatpush.msra.mxu0 %v1937
        %1995 = vmatpush.msra.mxu0 %v1936
        %1996 = vmatpush.msra.mxu0 %v1935
        %1997 = vmatpush.msra.mxu0 %v1934
        %1998 = vmatpush.msra.mxu0 %v1933
        %1999 = vmatpush.msra.mxu0 %v1932
        %2000 = vmatpush.msra.mxu0 %v1931
        %2001 = vmatmul.f32.gmra.mxu0 %v1926
        %v2002 = vpop.f32.mrf.mxu0
        %v2003 = vadd.f32 %v1981, %v2002
        %2004 = vdwg.mxu0
        %2005 = vmatpush.msra.mxu0 %v1962
        %2006 = vmatpush.msra.mxu0 %v1961
        %2007 = vmatpush.msra.mxu0 %v1960
        %2008 = vmatpush.msra.mxu0 %v1959
        %2009 = vmatpush.msra.mxu0 %v1958
        %2010 = vmatpush.msra.mxu0 %v1957
        %2011 = vmatpush.msra.mxu0 %v1956
        %2012 = vmatpush.msra.mxu0 %v1955
        %2013 = vmatpush.msra.mxu0 %v1954
        %2014 = vmatpush.msra.mxu0 %v1953
        %2015 = vmatpush.msra.mxu0 %v1952
        %2016 = vmatpush.msra.mxu0 %v1951
        %2017 = vmatpush.msra.mxu0 %v1950
        %2018 = vmatpush.msra.mxu0 %v1949
        %2019 = vmatpush.msra.mxu0 %v1948
        %2020 = vmatpush.msra.mxu0 %v1947
        %2021 = vmatmul.f32.gmra.mxu0 %v1929
        %v2022 = vpop.f32.mrf.mxu0
        %v2023 = vadd.f32 %v2003, %v2022
        %2024 = vdwg.mxu0
        %2025 = vmatpush.msra.mxu0 %v1978
        %2026 = vmatpush.msra.mxu0 %v1977
        %2027 = vmatpush.msra.mxu0 %v1976
        %2028 = vmatpush.msra.mxu0 %v1975
        %2029 = vmatpush.msra.mxu0 %v1974
        %2030 = vmatpush.msra.mxu0 %v1973
        %2031 = vmatpush.msra.mxu0 %v1972
        %2032 = vmatpush.msra.mxu0 %v1971
        %2033 = vmatpush.msra.mxu0 %v1970
        %2034 = vmatpush.msra.mxu0 %v1969
        %2035 = vmatpush.msra.mxu0 %v1968
        %2036 = vmatpush.msra.mxu0 %v1967
        %2037 = vmatpush.msra.mxu0 %v1966
        %2038 = vmatpush.msra.mxu0 %v1965
        %2039 = vmatpush.msra.mxu0 %v1964
        %2040 = vmatpush.msra.mxu0 %v1963
        %2041 = vmatmul.f32.gmra.mxu0 %v1930
        %v2042 = vpop.f32.mrf.mxu0
        %v2043 = vadd.f32 %v2023, %v2042
        %2044 = vdwg.mxu0
        %2045 = vmatpush.msra.mxu0 0.0
        %2046 = vmatpush.msra.mxu0 0.0
        %2047 = vmatpush.msra.mxu0 0.0
        %2048 = vmatpush.msra.mxu0 0.0
        %2049 = vmatpush.msra.mxu0 0.0
        %2050 = vmatpush.msra.mxu0 0.0
        %2051 = vmatpush.msra.mxu0 0.0
        %2052 = vmatpush.msra.mxu0 0.0
        %2053 = vmatpush.msra.mxu0 0.0
        %2054 = vmatpush.msra.mxu0 0.0
        %2055 = vmatpush.msra.mxu0 0.0
        %2056 = vmatpush.msra.mxu0 0.0
        %2057 = vmatpush.msra.mxu0 0.0
        %2058 = vmatpush.msra.mxu0 0.0
        %2059 = vmatpush.msra.mxu0 %v1980
        %2060 = vmatpush.msra.mxu0 %v1979
        %2061 = vmatmul.f32.gmra.mxu0 %v1983
        %v2062 = vpop.f32.mrf.mxu0
        %v2063 = vadd.f32 %v2043, %v2062
        %2064 = vdwg.mxu0
        %v2065 = vmax.f32 %v2063, 0.0
        %v2066 = vld [vmem:[%s15] sm:$0xff]
        %v2067 = vld [vmem:[%s15 + $0x8] sm:$0xff]
        %v2068 = vld [vmem:[%s15 + $0x10] sm:$0xff]
        %v2069 = vld [vmem:[%s15 + $0x18] sm:$0xff]
        %v2070 = vld [vmem:[%s15 + $0x20] sm:$0xff]
        %v2071 = vld [vmem:[%s15 + $0x28] sm:$0xff]
        %v2072 = vld [vmem:[%s15 + $0x30] sm:$0xff]
        %v2073 = vld [vmem:[%s15 + $0x38] sm:$0xff]
        %v2074 = vld [vmem:[%s15 + $0x40] sm:$0xff]
        %v2075 = vld [vmem:[%s15 + $0x48] sm:$0xff]
        %v2076 = vld [vmem:[%s15 + $0x50] sm:$0xff]
        %v2077 = vld [vmem:[%s15 + $0x58] sm:$0xff]
        %v2078 = vld [vmem:[%s15 + $0x60] sm:$0xff]
        %v2079 = vld [vmem:[%s15 + $0x68] sm:$0xff]
        %v2080 = vld [vmem:[%s15 + $0x70] sm:$0xff]
        %v2081 = vld [vmem:[%s16] sm:$0x1]
        %vm2082 = vcmask 982016
        %v2084 = vsel %vm2082, %v2065, 0
        %2086 = vmatpush.msra.mxu0 0.0
        %2087 = vmatpush.msra.mxu0 %v2080
        %2088 = vmatpush.msra.mxu0 %v2079
        %2089 = vmatpush.msra.mxu0 %v2078
        %2090 = vmatpush.msra.mxu0 %v2077
        %2091 = vmatpush.msra.mxu0 %v2076
        %2092 = vmatpush.msra.mxu0 %v2075
        %2093 = vmatpush.msra.mxu0 %v2074
        %2094 = vmatpush.msra.mxu0 %v2073
        %2095 = vmatpush.msra.mxu0 %v2072
        %2096 = vmatpush.msra.mxu0 %v2071
        %2097 = vmatpush.msra.mxu0 %v2070
        %2098 = vmatpush.msra.mxu0 %v2069
        %2099 = vmatpush.msra.mxu0 %v2068
        %2100 = vmatpush.msra.mxu0 %v2067
        %2101 = vmatpush.msra.mxu0 %v2066
        %2102 = vmatmul.f32.gmra.mxu0 %v2084
        %v2103 = vpop.f32.mrf.mxu0
        %v2104 = vadd.f32 %v2081, %v2103
        %2105 = vdwg.mxu0
        %v2106 = vmax.f32 %v2104, 0.0
        %v2107 = vld [vmem:[%s17] sm:$0xff]
        %v2108 = vld [vmem:[%s17 + $0x8] sm:$0xff]
        %v2109 = vld [vmem:[%s17 + $0x10] sm:$0xff]
        %v2110 = vld [vmem:[%s17 + $0x18] sm:$0xff]
        %v2111 = vld [vmem:[%s17 + $0x20] sm:$0xff]
        %v2112 = vld [vmem:[%s17 + $0x28] sm:$0xff]
        %v2113 = vld [vmem:[%s17 + $0x30] sm:$0xff]
        %v2114 = vld [vmem:[%s17 + $0x38] sm:$0xff]
        %v2115 = vld [vmem:[%s17 + $0x40] sm:$0xff]
        %v2116 = vld [vmem:[%s17 + $0x48] sm:$0xff]
        %v2117 = vld [vmem:[%s17 + $0x50] sm:$0xf]
        %v2118 = vld [vmem:[%s18] sm:$0x1]
        %v2120 = vsel %vm1365, %v2106, 0
        %v2123 = vsel %vm668, %v2117, 0
        %2125 = vmatpush.msra.mxu0 0.0
        %2126 = vmatpush.msra.mxu0 0.0
        %2127 = vmatpush.msra.mxu0 0.0
        %2128 = vmatpush.msra.mxu0 0.0
        %2129 = vmatpush.msra.mxu0 0.0
        %2130 = vmatpush.msra.mxu0 %v2123
        %2131 = vmatpush.msra.mxu0 %v2116
        %2132 = vmatpush.msra.mxu0 %v2115
        %2133 = vmatpush.msra.mxu0 %v2114
        %2134 = vmatpush.msra.mxu0 %v2113
        %2135 = vmatpush.msra.mxu0 %v2112
        %2136 = vmatpush.msra.mxu0 %v2111
        %2137 = vmatpush.msra.mxu0 %v2110
        %2138 = vmatpush.msra.mxu0 %v2109
        %2139 = vmatpush.msra.mxu0 %v2108
        %2140 = vmatpush.msra.mxu0 %v2107
        %2141 = vmatmul.f32.gmra.mxu0 %v2120
        %v2142 = vpop.f32.mrf.mxu0
        %v2143 = vadd.f32 %v2118, %v2142
        %2144 = vdwg.mxu0
        %vm2145 = vcmask 73728
        %2146 = vst.msk [vmem:[%s594] sm:$0x1] %vm2145, %v2143
        %s2147 = sand.u32 %s445, 1
        %s2148 = scalar_lea.sflag [#allocation3], %s2147
        %s2149 = sand.u32 %s445, 1
        %s2150 = scalar_lea.vmem [#allocation2], %s2149
        // Predicated region
        $region97: #{simplenet_forward.1} parent=95 // pred_check
          %p2151 = pneg %p455
        $region98: #{simplenet_forward.1} parent=95 // pred_check_branch
          %2153 = sbr.rel (%p2151) target = $region100
        $region99: #{simplenet_forward.1} parent=95 // pred_region
          %2155 = vsyncadd %s2148, 0
          %s2156 = scalar_lea.hbm %s19, %s33
          %s2158 = sshll.u32 %s2150, 4
          %s2159 = int_to_ptr.vmem [resolvable:$true] %s2158
          %s2160 = sshll.u32 %s2156, 4
          %s2161 = int_to_ptr.hbm [resolvable:$true] %s2160
          %2163 = dma.vmem_to_hbm [thread:$0]  %s2159, 16, %s2161, %s2148
        $region100: #{simplenet_forward.1} parent=95 // pred_fallthru
          _
      $region96: #{simplenet_forward.1} parent=5 // pred_fallthru
        _
      %p2164 = scmp.le.s32.totalorder 2, %s28
      // Predicated region
      $region101: #{simplenet_forward.1} parent=5 // pred_check
        %p2165 = pneg %p2164
      $region102: #{simplenet_forward.1} parent=5 // pred_check_branch
        %2167 = sbr.rel (%p2165) target = $region104
      $region103: #{simplenet_forward.1} parent=5 // pred_region
        %s2168 = ssub.s32 %s28, 2
        // Predicated region
        $region105: #{simplenet_forward.1} parent=103 // pred_check
          %p2169 = pneg %p461
        $region106: #{simplenet_forward.1} parent=103 // pred_check_branch
          %2171 = sbr.rel (%p2169) target = $region108
        $region107: #{simplenet_forward.1} parent=103 // pred_region
          %s2172 = sand.u32 %s446, 1
          %s2173 = scalar_lea.sflag [#allocation3], %s2172
          %s2174 = sand.u32 %s446, 1
          %s2175 = scalar_lea.vmem [#allocation2], %s2174
          %2177 = dma.done %s2173, 16
        $region108: #{simplenet_forward.1} parent=103 // pred_fallthru
          _
      $region104: #{simplenet_forward.1} parent=5 // pred_fallthru
        _
    $region6: #{simplenet_forward.1} parent=1 // loop_footer
      %s32 = sadd.s32 1, %s28
    $region7: #{simplenet_forward.1} parent=1 // loop_footer_branch
      %27 = sbr.rel target = $region3
    $region8: #{simplenet_forward.1} parent=1 // loop_exit
      _
    %2178 = vsyncpa [#allocation3], 1
    %s2179 = scalar_lea.sflag [#allocation3], 1
    %2180 = vsyncpa %s2179, 1

</llo_original>
